<compile_context>
chip_gen: v5e
topology: v5e:2x2
jax: 0.10.0
libtpu: 0.0.40
codegen_flags: <defaults>
</compile_context>

<pallas_src>
import functools

import jax
import jax.numpy as jnp
from jax import lax
from jax.experimental import pallas as pl
from jax.experimental.pallas import tpu as pltpu


# ---------------------------------------------------------------------------
# Tiling helpers
# ---------------------------------------------------------------------------
def _pick_row_tile(OH, bytes_per_row, vmem_budget, want_multiple_tiles):
    """Largest divisor of OH that keeps the block Mosaic-friendly (multiple of 8
    sublanes, or the full dim) and fits the VMEM budget; optionally prefers
    >= 2 tiles so both v7x TensorCores get work when the batch axis is tiny."""
    cands = [d for d in range(1, OH + 1)
             if OH % d == 0 and (d % 8 == 0 or d == OH)]
    fitting = [d for d in cands if d * bytes_per_row <= vmem_budget]
    if not fitting:
        fitting = [min(cands)]
    if want_multiple_tiles:
        split = [d for d in fitting if OH // d >= 2]
        if split:
            fitting = split
    return max(fitting)


# ---------------------------------------------------------------------------
# Kernel 1: conv as KH accumulated MXU matmuls of contiguous lane-folded input
#           rows against a block-Toeplitz weight slab, plus partial BN stats.
# ---------------------------------------------------------------------------
def _conv_stats_kernel(x_ref, wt_ref, y_ref, psum_ref, psq_ref, *, KH, part_rows):
    # x_ref:   (1, KH, th, Wpad*C)   per-tap input rows, (w, c) folded on lanes
    # wt_ref:  (KH, Wpad*C, OW*OC)   block-Toeplitz weights (constant block idx
    #                                -> DMA'd once, stays resident)
    # y_ref:   (1, th, OW*OC)        lane-dense conv output tile (f32)
    # psum/psq:(1, 1, part_rows, OW*OC) partial batch-norm statistics
    acc = jnp.dot(x_ref[0, 0], wt_ref[0], preferred_element_type=jnp.float32)
    for kh in range(1, KH):                       # static, tiny trip count
        acc = acc + jnp.dot(x_ref[0, kh], wt_ref[kh],
                            preferred_element_type=jnp.float32)
    y_ref[0] = acc.astype(y_ref.dtype)

    th, owoc = acc.shape
    if part_rows == 8:
        # Pure-VPU partial: reduce across vreg-row groups only; the tiny final
        # cross-sublane / cross-tile reduction happens in plain JAX.
        part_s = jnp.sum(acc.reshape(th // 8, 8, owoc), axis=0)
        part_q = jnp.sum((acc * acc).reshape(th // 8, 8, owoc), axis=0)
    else:
        part_s = jnp.sum(acc, axis=0, keepdims=True)
        part_q = jnp.sum(acc * acc, axis=0, keepdims=True)
    psum_ref[0, 0] = part_s
    psq_ref[0, 0] = part_q


# ---------------------------------------------------------------------------
# Kernel 2: fused BatchNorm (precomputed scale/shift, tiled over (ow, oc) lanes)
#           + ReLU + 2x2 max-pool.  Contiguous loads only.
# ---------------------------------------------------------------------------
def _bn_relu_pool_kernel(y_ref, sc_ref, sh_ref, o_ref, *, thp, Wp, OC):
    # y_ref: (1, rows_blk, OW*OC); sc/sh: (1, OW*OC); o_ref: (1, thp, Wp, OC)
    v = y_ref[0][:2 * thp]                                   # drop odd last row
    v = jnp.maximum(v * sc_ref[...] + sh_ref[...], 0.0)      # BN + ReLU
    v = jnp.max(v.reshape(thp, 2, v.shape[-1]), axis=1)      # pool over H (free)
    v = v[:, :Wp * 2 * OC]                                   # drop odd last col
    v = v.reshape(thp, Wp, 2 * OC)
    o_ref[0] = jnp.maximum(v[:, :, :OC], v[:, :, OC:])       # pool over W


# ---------------------------------------------------------------------------
# ConvBlock forward.
# ---------------------------------------------------------------------------
@functools.partial(jax.jit, static_argnames=("stride", "padding", "compute_dtype"))
def conv_block_forward(x, weight, bias, gamma, beta, *, stride, padding,
                       eps=1e-5, compute_dtype=jnp.float32):
    """x: (N, C, H, W) NCHW.  weight: (OC, C, KH, KW).  Returns NCHW output.

    compute_dtype: matmul LHS / weight dtype (bf16 is the MXU fast path on
    v6e/v7x; keep f32 on v5e).  Accumulation and all BN math stay float32.
    """
    N, C, H, W = x.shape
    OC, _, KH, KW = weight.shape
    s, p = stride, padding
    OH = (H + 2 * p - KH) // s + 1
    OW = (W + 2 * p - KW) // s + 1
    Hp, Wp = OH // 2, OW // 2                     # MaxPool2d(2), floor mode
    Hpad, Wpad = H + 2 * p, W + 2 * p
    RL = Wpad * C                                 # lane-folded (w, c) row length
    OWOC = OW * OC                                # lane-folded (ow, oc) row length
    cdt = compute_dtype
    itemsize = jnp.dtype(cdt).itemsize

    # Conv bias is intentionally dropped: a per-channel constant before
    # train-mode BatchNorm is exactly cancelled by the batch mean.
    # TODO(synk): re-apply the bias if this path is ever reused with eval-mode /
    # running-stats BatchNorm.
    del bias

    # ---- prologue (tiny XLA glue) -------------------------------------------
    # Padded NHWC slab with (w, c) folded onto the lane axis, then one row-slab
    # per kernel row kh holding exactly the input rows tap kh needs (h*s + kh).
    # Every kernel operand becomes a contiguous slice (zero in-kernel relayout)
    # and the per-tile input block is only the th rows it needs (halo tiling).
    x_pad = jnp.pad(x.transpose(0, 2, 3, 1), ((0, 0), (p, p), (p, p), (0, 0)))
    x_fold = x_pad.reshape(N, Hpad, RL).astype(cdt)
    x_taps = jnp.stack(
        [lax.slice_in_dim(x_fold, kh, kh + (OH - 1) * s + 1, s, axis=1)
         for kh in range(KH)], axis=1)                        # (N, KH, OH, RL)

    # Block-Toeplitz weight slab:
    #   toep[kh, w*C + c, ow*OC + oc] = weight[oc, c, kh, w - ow*s]
    # (zero where w - ow*s is outside [0, KW)).  One lane-dense MXU matmul per
    # (tile, kh): no OC->128 padding, no im2col anywhere.
    # TODO(synk): for large W*C this slab grows O(W^2*C*OC); tile the W axis
    # (the Toeplitz block is shared by all column tiles) before using this for
    # big images.
    w_t = weight.transpose(2, 3, 1, 0)                        # (KH, KW, C, OC)
    kw_rel = jnp.arange(Wpad)[:, None] - jnp.arange(OW)[None, :] * s
    valid = (kw_rel >= 0) & (kw_rel < KW)
    toep = w_t[:, jnp.clip(kw_rel, 0, KW - 1)]                # (KH, Wpad, OW, C, OC)
    toep = toep * valid[None, :, :, None, None].astype(w_t.dtype)
    toep = toep.transpose(0, 1, 3, 2, 4).reshape(KH, RL, OWOC).astype(cdt)

    # ---- stage 1: conv + partial BN batch stats (Pallas) ---------------------
    bytes_per_row = KH * RL * itemsize + OWOC * 4
    th = _pick_row_tile(OH, bytes_per_row, vmem_budget=8 << 20,
                        want_multiple_tiles=(N < 2))
    T = OH // th
    part_rows = 8 if th % 8 == 0 else 1

    toep_bytes = KH * RL * OWOC * itemsize
    blk_bytes = th * bytes_per_row + 2 * part_rows * OWOC * 4
    vmem_limit1 = int(min(64 << 20, max(24 << 20, 3 * blk_bytes + 2 * toep_bytes)))
    cost1 = pl.CostEstimate(
        flops=2 * N * OH * KH * RL * OWOC,
        transcendentals=0,
        bytes_accessed=(N * KH * OH * RL * itemsize + toep_bytes
                        + N * OH * OWOC * 4 + 2 * N * T * part_rows * OWOC * 4))

    conv_out, psum, psq = pl.pallas_call(
        functools.partial(_conv_stats_kernel, KH=KH, part_rows=part_rows),
        out_shape=(
            jax.ShapeDtypeStruct((N, OH, OWOC), jnp.float32),
            jax.ShapeDtypeStruct((N, T, part_rows, OWOC), jnp.float32),
            jax.ShapeDtypeStruct((N, T, part_rows, OWOC), jnp.float32),
        ),
        grid=(N, T),
        in_specs=[
            pl.BlockSpec((1, KH, th, RL), lambda n, i: (n, 0, i, 0)),
            pl.BlockSpec((KH, RL, OWOC), lambda n, i: (0, 0, 0)),
        ],
        out_specs=(
            pl.BlockSpec((1, th, OWOC), lambda n, i: (n, i, 0)),
            pl.BlockSpec((1, 1, part_rows, OWOC), lambda n, i: (n, i, 0, 0)),
            pl.BlockSpec((1, 1, part_rows, OWOC), lambda n, i: (n, i, 0, 0)),
        ),
        compiler_params=pltpu.CompilerParams(
            dimension_semantics=("parallel", "parallel"),
            vmem_limit_bytes=vmem_limit1),
        cost_estimate=cost1,
    )(x_taps, toep)

    # ---- tiny per-channel stats math (plain JAX) -----------------------------
    cnt = N * OH * OW
    sum_oc = psum.sum(axis=(0, 1, 2)).reshape(OW, OC).sum(axis=0)     # (OC,)
    sumsq_oc = psq.sum(axis=(0, 1, 2)).reshape(OW, OC).sum(axis=0)
    mean = sum_oc / cnt
    # TODO(synk): E[x^2]-E[x]^2 can cancel for large-mean activations; a Welford
    # combine / shifted two-pass variance would be safer if that regime matters.
    var = jnp.maximum(sumsq_oc / cnt - mean * mean, 0.0)              # biased (BN train)
    inv_std = lax.rsqrt(var + eps)
    scale = gamma * inv_std
    shift = beta - mean * scale
    # Tile per-OC scale/shift across ow so they broadcast over the folded
    # (ow, oc) lane axis of the conv intermediate.
    scale_t = jnp.tile(scale, OW).reshape(1, OWOC).astype(jnp.float32)
    shift_t = jnp.tile(shift, OW).reshape(1, OWOC).astype(jnp.float32)

    # ---- stage 2: fused BN + ReLU + 2x2 max-pool (Pallas) --------------------
    cands2 = [d for d in range(1, Hp + 1)
              if Hp % d == 0 and ((2 * d) % 8 == 0 or 2 * d == OH)
              and 2 * d * OWOC * 4 <= (8 << 20)]
    if cands2:
        thp = max(cands2)
        rows_blk = 2 * thp
    else:
        thp, rows_blk = Hp, OH          # fall back to whole-image rows per step
    Tp = Hp // thp

    vmem_limit2 = int(min(64 << 20, max(
        24 << 20, 3 * (rows_blk * OWOC * 4 + thp * Wp * OC * 4) + 4 * OWOC * 4)))
    cost2 = pl.CostEstimate(
        flops=4 * N * OH * OWOC,
        transcendentals=0,
        bytes_accessed=N * OH * OWOC * 4 + N * Hp * Wp * OC * 4 + 2 * OWOC * 4)

    out_nhwc = pl.pallas_call(
        functools.partial(_bn_relu_pool_kernel, thp=thp, Wp=Wp, OC=OC),
        out_shape=jax.ShapeDtypeStruct((N, Hp, Wp, OC), jnp.float32),
        grid=(N, Tp),
        in_specs=[
            pl.BlockSpec((1, rows_blk, OWOC), lambda n, j: (n, j, 0)),
            pl.BlockSpec((1, OWOC), lambda n, j: (0, 0)),
            pl.BlockSpec((1, OWOC), lambda n, j: (0, 0)),
        ],
        out_specs=pl.BlockSpec((1, thp, Wp, OC), lambda n, j: (n, j, 0, 0)),
        compiler_params=pltpu.CompilerParams(
            dimension_semantics=("parallel", "parallel"),
            vmem_limit_bytes=vmem_limit2),
        cost_estimate=cost2,
    )(conv_out, scale_t, shift_t)

    # Tiny epilogue: transpose the small, unpadded pooled result to NCHW.
    return out_nhwc.transpose(0, 3, 1, 2)


# ---------------------------------------------------------------------------
# Pure-JAX reference for validation (includes the conv bias; train-mode BN
# cancels it, so results must match the bias-free kernel path).
# ---------------------------------------------------------------------------
def conv_block_reference(x, weight, bias, gamma, beta, *, stride, padding,
                         eps=1e-5):
    y = lax.conv_general_dilated(
        x, weight, window_strides=(stride, stride),
        padding=[(padding, padding), (padding, padding)],
        dimension_numbers=("NCHW", "OIHW", "NCHW"))
    y = y + bias[None, :, None, None]
    mean = y.mean(axis=(0, 2, 3))
    var = y.var(axis=(0, 2, 3))
    y = (y - mean[None, :, None, None]) / jnp.sqrt(var + eps)[None, :, None, None]
    y = y * gamma[None, :, None, None] + beta[None, :, None, None]
    y = jnp.maximum(y, 0.0)
    N, OC, OH, OW = y.shape
    Hp, Wp = OH // 2, OW // 2
    y = y[:, :, :2 * Hp, :2 * Wp].reshape(N, OC, Hp, 2, Wp, 2)
    return y.max(axis=(3, 5))


if __name__ == "__main__":
    key = jax.random.PRNGKey(0)
    k_x, k_w, k_b = jax.random.split(key, 3)

    # ConvBlock(in_channels=4, out_channels=8, kernel_size=3, stride=1, padding=1)
    N, C, H, W = 2, 4, 16, 16
    OC, KH, KW = 8, 3, 3
    stride, padding = 1, 1

    x = jax.random.normal(k_x, (N, C, H, W), dtype=jnp.float32)

    # Deterministic params: xavier_normal_ conv weight (init_weights), PyTorch
    # default conv bias, BatchNorm gamma=1, beta=0.
    fan_in = C * KH * KW
    fan_out = OC * KH * KW
    xavier_std = (2.0 / (fan_in + fan_out)) ** 0.5
    weight = xavier_std * jax.random.normal(k_w, (OC, C, KH, KW), dtype=jnp.float32)
    bound = 1.0 / (fan_in ** 0.5)
    bias = jax.random.uniform(k_b, (OC,), minval=-bound, maxval=bound,
                              dtype=jnp.float32)
    gamma = jnp.ones((OC,), jnp.float32)
    beta = jnp.zeros((OC,), jnp.float32)

    out = conv_block_forward(x, weight, bias, gamma, beta,
                             stride=stride, padding=padding)
    out = jax.block_until_ready(out)
    assert out.shape == (N, OC, H // 2, W // 2), out.shape

    ref = conv_block_reference(x, weight, bias, gamma, beta,
                               stride=stride, padding=padding)
    err = float(jnp.max(jnp.abs(out - ref)))
    # Tolerance covers the MXU's default reduced-precision f32 passes on real
    # hardware; interpret / full-precision runs agree to ~1e-6.
    assert err < 2e-2, err

    print("KERNEL_OK")
</pallas_src>

<mosaic_0001>
module attributes {stable_mosaic.version = 11 : i64} {
  func.func @_conv_stats_kernel(%arg0: i32, %arg1: i32, %arg2: memref<1x3x16x72xf32, #tpu.memory_space<vmem>>, %arg3: memref<3x72x128xf32, #tpu.memory_space<vmem>>, %arg4: memref<1x16x128xf32, #tpu.memory_space<vmem>>, %arg5: memref<1x1x8x128xf32, #tpu.memory_space<vmem>>, %arg6: memref<1x1x8x128xf32, #tpu.memory_space<vmem>>) attributes {dimension_semantics = [#tpu.dimension_semantics<parallel>, #tpu.dimension_semantics<parallel>], iteration_bounds = array<i64: 2, 1>, scalar_prefetch = 0 : i64, scratch_operands = 0 : i64, tpu.core_type = #tpu.core_type<tc>, window_params = [{transform_indices = @transform_0, window_bounds = array<i64: 1, 3, 16, 72>}, {pipeline_mode = #tpu.pipeline_mode<synchronous>, transform_indices = @transform_1, window_bounds = array<i64: 3, 72, 128>}, {transform_indices = @transform_2, window_bounds = array<i64: 1, 16, 128>}, {transform_indices = @transform_3, window_bounds = array<i64: 1, 1, 8, 128>}, {transform_indices = @transform_4, window_bounds = array<i64: 1, 1, 8, 128>}]} {
    %c0 = arith.constant 0 : index
    %c0_0 = arith.constant 0 : index
    %c0_1 = arith.constant 0 : index
    %c0_2 = arith.constant 0 : index
    %0 = vector.load %arg2[%c0, %c0_0, %c0_1, %c0_2] : memref<1x3x16x72xf32, #tpu.memory_space<vmem>>, vector<1x1x16x72xf32>
    %1 = vector.shape_cast %0 : vector<1x1x16x72xf32> to vector<16x72xf32>
    %c0_3 = arith.constant 0 : index
    %c0_4 = arith.constant 0 : index
    %c0_5 = arith.constant 0 : index
    %2 = vector.load %arg3[%c0_3, %c0_4, %c0_5] : memref<3x72x128xf32, #tpu.memory_space<vmem>>, vector<1x72x128xf32>
    %3 = vector.shape_cast %2 : vector<1x72x128xf32> to vector<72x128xf32>
    %cst = arith.constant dense<0.000000e+00> : vector<16x128xf32>
    %4 = tpu.matmul %1, %3, %cst {dimension_numbers = #tpu.dot_dimension_numbers<[1], [0], [0], [1], [0, 0, 1, 1], [], []>} : vector<16x72xf32>, vector<72x128xf32>, vector<16x128xf32> -> vector<16x128xf32>
    %c0_6 = arith.constant 0 : index
    %c1 = arith.constant 1 : index
    %c0_7 = arith.constant 0 : index
    %c0_8 = arith.constant 0 : index
    %5 = vector.load %arg2[%c0_6, %c1, %c0_7, %c0_8] : memref<1x3x16x72xf32, #tpu.memory_space<vmem>>, vector<1x1x16x72xf32>
    %6 = vector.shape_cast %5 : vector<1x1x16x72xf32> to vector<16x72xf32>
    %c1_9 = arith.constant 1 : index
    %c0_10 = arith.constant 0 : index
    %c0_11 = arith.constant 0 : index
    %7 = vector.load %arg3[%c1_9, %c0_10, %c0_11] : memref<3x72x128xf32, #tpu.memory_space<vmem>>, vector<1x72x128xf32>
    %8 = vector.shape_cast %7 : vector<1x72x128xf32> to vector<72x128xf32>
    %cst_12 = arith.constant dense<0.000000e+00> : vector<16x128xf32>
    %9 = tpu.matmul %6, %8, %cst_12 {dimension_numbers = #tpu.dot_dimension_numbers<[1], [0], [0], [1], [0, 0, 1, 1], [], []>} : vector<16x72xf32>, vector<72x128xf32>, vector<16x128xf32> -> vector<16x128xf32>
    %10 = arith.addf %4, %9 : vector<16x128xf32>
    %c0_13 = arith.constant 0 : index
    %c2 = arith.constant 2 : index
    %c0_14 = arith.constant 0 : index
    %c0_15 = arith.constant 0 : index
    %11 = vector.load %arg2[%c0_13, %c2, %c0_14, %c0_15] : memref<1x3x16x72xf32, #tpu.memory_space<vmem>>, vector<1x1x16x72xf32>
    %12 = vector.shape_cast %11 : vector<1x1x16x72xf32> to vector<16x72xf32>
    %c2_16 = arith.constant 2 : index
    %c0_17 = arith.constant 0 : index
    %c0_18 = arith.constant 0 : index
    %13 = vector.load %arg3[%c2_16, %c0_17, %c0_18] : memref<3x72x128xf32, #tpu.memory_space<vmem>>, vector<1x72x128xf32>
    %14 = vector.shape_cast %13 : vector<1x72x128xf32> to vector<72x128xf32>
    %cst_19 = arith.constant dense<0.000000e+00> : vector<16x128xf32>
    %15 = tpu.matmul %12, %14, %cst_19 {dimension_numbers = #tpu.dot_dimension_numbers<[1], [0], [0], [1], [0, 0, 1, 1], [], []>} : vector<16x72xf32>, vector<72x128xf32>, vector<16x128xf32> -> vector<16x128xf32>
    %16 = arith.addf %10, %15 : vector<16x128xf32>
    %c0_20 = arith.constant 0 : index
    %c0_21 = arith.constant 0 : index
    %c0_22 = arith.constant 0 : index
    %17 = vector.load %arg4[%c0_20, %c0_21, %c0_22] : memref<1x16x128xf32, #tpu.memory_space<vmem>>, vector<1x16x128xf32>
    %18 = vector.shape_cast %17 : vector<1x16x128xf32> to vector<16x128xf32>
    %19 = vector.shape_cast %16 : vector<16x128xf32> to vector<1x16x128xf32>
    tpu.vector_store %arg4[%c0_20, %c0_21, %c0_22], %19 {strides = array<i32>} : memref<1x16x128xf32, #tpu.memory_space<vmem>>, vector<1x16x128xf32>,
    %20 = vector.shape_cast %16 : vector<16x128xf32> to vector<2x8x128xf32>
    %cst_23 = arith.constant dense<0.000000e+00> : vector<8x128xf32>
    %21 = vector.multi_reduction <add>, %20, %cst_23 [0] : vector<2x8x128xf32> to vector<8x128xf32>
    %22 = arith.mulf %16, %16 : vector<16x128xf32>
    %23 = vector.shape_cast %22 : vector<16x128xf32> to vector<2x8x128xf32>
    %cst_24 = arith.constant dense<0.000000e+00> : vector<8x128xf32>
    %24 = vector.multi_reduction <add>, %23, %cst_24 [0] : vector<2x8x128xf32> to vector<8x128xf32>
    %c0_25 = arith.constant 0 : index
    %c0_26 = arith.constant 0 : index
    %c0_27 = arith.constant 0 : index
    %c0_28 = arith.constant 0 : index
    %25 = vector.load %arg5[%c0_25, %c0_26, %c0_27, %c0_28] : memref<1x1x8x128xf32, #tpu.memory_space<vmem>>, vector<1x1x8x128xf32>
    %26 = vector.shape_cast %25 : vector<1x1x8x128xf32> to vector<8x128xf32>
    %27 = vector.shape_cast %21 : vector<8x128xf32> to vector<1x1x8x128xf32>
    tpu.vector_store %arg5[%c0_25, %c0_26, %c0_27, %c0_28], %27 {strides = array<i32>} : memref<1x1x8x128xf32, #tpu.memory_space<vmem>>, vector<1x1x8x128xf32>,
    %c0_29 = arith.constant 0 : index
    %c0_30 = arith.constant 0 : index
    %c0_31 = arith.constant 0 : index
    %c0_32 = arith.constant 0 : index
    %28 = vector.load %arg6[%c0_29, %c0_30, %c0_31, %c0_32] : memref<1x1x8x128xf32, #tpu.memory_space<vmem>>, vector<1x1x8x128xf32>
    %29 = vector.shape_cast %28 : vector<1x1x8x128xf32> to vector<8x128xf32>
    %30 = vector.shape_cast %24 : vector<8x128xf32> to vector<1x1x8x128xf32>
    tpu.vector_store %arg6[%c0_29, %c0_30, %c0_31, %c0_32], %30 {strides = array<i32>} : memref<1x1x8x128xf32, #tpu.memory_space<vmem>>, vector<1x1x8x128xf32>,
    return
  }
  func.func @transform_0(%arg0: i32, %arg1: i32) -> (i32, i32, i32, i32) {
    %c0_i32 = arith.constant 0 : i32
    %c0_i32_0 = arith.constant 0 : i32
    %c0_i32_1 = arith.constant 0 : i32
    return %arg0, %c0_i32, %arg1, %c0_i32_0 : i32, i32, i32, i32
  }
  func.func @transform_1(%arg0: i32, %arg1: i32) -> (i32, i32, i32) {
    %c0_i32 = arith.constant 0 : i32
    %c0_i32_0 = arith.constant 0 : i32
    %c0_i32_1 = arith.constant 0 : i32
    %c0_i32_2 = arith.constant 0 : i32
    return %c0_i32, %c0_i32_0, %c0_i32_1 : i32, i32, i32
  }
  func.func @transform_2(%arg0: i32, %arg1: i32) -> (i32, i32, i32) {
    %c0_i32 = arith.constant 0 : i32
    %c0_i32_0 = arith.constant 0 : i32
    return %arg0, %arg1, %c0_i32 : i32, i32, i32
  }
  func.func @transform_3(%arg0: i32, %arg1: i32) -> (i32, i32, i32, i32) {
    %c0_i32 = arith.constant 0 : i32
    %c0_i32_0 = arith.constant 0 : i32
    %c0_i32_1 = arith.constant 0 : i32
    return %arg0, %arg1, %c0_i32, %c0_i32_0 : i32, i32, i32, i32
  }
  func.func @transform_4(%arg0: i32, %arg1: i32) -> (i32, i32, i32, i32) {
    %c0_i32 = arith.constant 0 : i32
    %c0_i32_0 = arith.constant 0 : i32
    %c0_i32_1 = arith.constant 0 : i32
    return %arg0, %arg1, %c0_i32, %c0_i32_0 : i32, i32, i32, i32
  }
}

module attributes {stable_mosaic.version = 11 : i64} {
  func.func @_bn_relu_pool_kernel(%arg0: i32, %arg1: i32, %arg2: memref<1x16x128xf32, #tpu.memory_space<vmem>>, %arg3: memref<1x128xf32, #tpu.memory_space<vmem>>, %arg4: memref<1x128xf32, #tpu.memory_space<vmem>>, %arg5: memref<1x8x8x8xf32, #tpu.memory_space<vmem>>) attributes {dimension_semantics = [#tpu.dimension_semantics<parallel>, #tpu.dimension_semantics<parallel>], iteration_bounds = array<i64: 2, 1>, scalar_prefetch = 0 : i64, scratch_operands = 0 : i64, tpu.core_type = #tpu.core_type<tc>, window_params = [{transform_indices = @transform_0, window_bounds = array<i64: 1, 16, 128>}, {pipeline_mode = #tpu.pipeline_mode<synchronous>, transform_indices = @transform_1, window_bounds = array<i64: 1, 128>}, {pipeline_mode = #tpu.pipeline_mode<synchronous>, transform_indices = @transform_2, window_bounds = array<i64: 1, 128>}, {transform_indices = @transform_3, window_bounds = array<i64: 1, 8, 8, 8>}]} {
    %c0 = arith.constant 0 : index
    %c0_0 = arith.constant 0 : index
    %c0_1 = arith.constant 0 : index
    %0 = vector.load %arg2[%c0, %c0_0, %c0_1] : memref<1x16x128xf32, #tpu.memory_space<vmem>>, vector<1x16x128xf32>
    %1 = vector.shape_cast %0 : vector<1x16x128xf32> to vector<16x128xf32>
    %c0_2 = arith.constant 0 : index
    %c0_3 = arith.constant 0 : index
    %2 = vector.load %arg3[%c0_2, %c0_3] : memref<1x128xf32, #tpu.memory_space<vmem>>, vector<1x128xf32>
    %3 = vector.broadcast %2 : vector<1x128xf32> to vector<16x128xf32>
    %4 = arith.mulf %1, %3 : vector<16x128xf32>
    %c0_4 = arith.constant 0 : index
    %c0_5 = arith.constant 0 : index
    %5 = vector.load %arg4[%c0_4, %c0_5] : memref<1x128xf32, #tpu.memory_space<vmem>>, vector<1x128xf32>
    %6 = vector.broadcast %5 : vector<1x128xf32> to vector<16x128xf32>
    %7 = arith.addf %4, %6 : vector<16x128xf32>
    %cst = arith.constant 0.000000e+00 : f32
    %8 = vector.broadcast %cst : f32 to vector<16x128xf32>
    %9 = arith.maximumf %7, %8 : vector<16x128xf32>
    %10 = vector.shape_cast %9 : vector<16x128xf32> to vector<8x2x128xf32>
    %cst_6 = arith.constant dense<0xFF800000> : vector<8x128xf32>
    %11 = vector.multi_reduction <maximumf>, %10, %cst_6 [1] : vector<8x2x128xf32> to vector<8x128xf32>
    %12 = vector.shape_cast %11 : vector<8x128xf32> to vector<8x8x16xf32>
    %13 = vector.extract_strided_slice %12 {offsets = [0, 0, 0], sizes = [8, 8, 8], strides = [1, 1, 1]} : vector<8x8x16xf32> to vector<8x8x8xf32>
    %14 = vector.extract_strided_slice %12 {offsets = [0, 0, 8], sizes = [8, 8, 8], strides = [1, 1, 1]} : vector<8x8x16xf32> to vector<8x8x8xf32>
    %15 = arith.maximumf %13, %14 : vector<8x8x8xf32>
    %c0_7 = arith.constant 0 : index
    %c0_8 = arith.constant 0 : index
    %c0_9 = arith.constant 0 : index
    %c0_10 = arith.constant 0 : index
    %16 = vector.load %arg5[%c0_7, %c0_8, %c0_9, %c0_10] : memref<1x8x8x8xf32, #tpu.memory_space<vmem>>, vector<1x8x8x8xf32>
    %17 = vector.shape_cast %16 : vector<1x8x8x8xf32> to vector<8x8x8xf32>
    %18 = vector.shape_cast %15 : vector<8x8x8xf32> to vector<1x8x8x8xf32>
    tpu.vector_store %arg5[%c0_7, %c0_8, %c0_9, %c0_10], %18 {strides = array<i32>} : memref<1x8x8x8xf32, #tpu.memory_space<vmem>>, vector<1x8x8x8xf32>,
    return
  }
  func.func @transform_0(%arg0: i32, %arg1: i32) -> (i32, i32, i32) {
    %c0_i32 = arith.constant 0 : i32
    %c0_i32_0 = arith.constant 0 : i32
    return %arg0, %arg1, %c0_i32 : i32, i32, i32
  }
  func.func @transform_1(%arg0: i32, %arg1: i32) -> (i32, i32) {
    %c0_i32 = arith.constant 0 : i32
    %c0_i32_0 = arith.constant 0 : i32
    %c0_i32_1 = arith.constant 0 : i32
    return %c0_i32, %c0_i32_0 : i32, i32
  }
  func.func @transform_2(%arg0: i32, %arg1: i32) -> (i32, i32) {
    %c0_i32 = arith.constant 0 : i32
    %c0_i32_0 = arith.constant 0 : i32
    %c0_i32_1 = arith.constant 0 : i32
    return %c0_i32, %c0_i32_0 : i32, i32
  }
  func.func @transform_3(%arg0: i32, %arg1: i32) -> (i32, i32, i32, i32) {
    %c0_i32 = arith.constant 0 : i32
    %c0_i32_0 = arith.constant 0 : i32
    %c0_i32_1 = arith.constant 0 : i32
    return %arg0, %arg1, %c0_i32, %c0_i32_0 : i32, i32, i32, i32
  }
}

</mosaic_0001>

<llo_original>
// kernel: conv_block_forward.2
$region0: #{conv_block_forward.2}
  #allocation0 [shape = 'u32[]', space=smem, size = 0x4, offset = 0x4, fixed_abs, tag = 'smem constant byte address 0x4 - core index']
  #allocation1 [shape = 'u32[72,128]{1,0:T(1,128)}', space=vmem, size = 0x9000, scoped, tag = 'internal scratch']
  %s0 = inlined_call_operand.vmem [shape: f32[2,3,16,72], index: 0, kind: input, shape index: {}]
  %s1 = inlined_call_operand.vmem [shape: f32[3,72,128], index: 1, kind: input, shape index: {}]
  %s2 = inlined_call_operand.vmem [shape: f32[2,16,128], index: 2, kind: output, shape index: {0}]
  %s3 = inlined_call_operand.vmem [shape: f32[2,1,8,128], index: 3, kind: output, shape index: {1}]
  %s4 = inlined_call_operand.vmem [shape: f32[2,1,8,128], index: 4, kind: output, shape index: {2}]
  %5 = xla_tuple %s2, %s3, %s4
  %s6 = sld [smem:[#allocation0]]
  $region57: #{conv_block_forward.2} parent=0
    _
  %s8 = ssub.s32 1, %s6
  %s9 = scalar_select 0, %s8, %s6
  loop: start=0, step=1, limit=4
  $region2: #{conv_block_forward.2} parent=0 // loop_pre_header
    _
  $region3: #{conv_block_forward.2} parent=0 // loop_header
    %s11 = sphi 0, %s15
    %p12 = scmp.ge.s32.totalorder %s11, 4
    %s18 = sphi 0, %s30
    %s19 = sphi 0, %s26
    %s20 = sphi 0, %s18
    %s21 = sphi 0, %s19
    %s22 = sphi 0, %s20
    %s23 = sphi 0, %s21
    %s35 = sphi 0, %s37
    %s38 = sphi 0, %s35
    %s39 = sphi 0, %s38
    %s55 = sphi 0, %s39
    %s59 = sphi 0, %s59
    %s61 = sphi 0, %s59
    %s62 = sphi 0, %s61
    %s76 = sphi 0, %s62
    %s84 = sphi 0, %s86
    %s87 = sphi 0, %s84
    %s88 = sphi 0, %s87
    %s104 = sphi 0, %s88
    %s112 = sphi 0, %s114
    %s115 = sphi 0, %s112
    %s116 = sphi 0, %s115
    %s132 = sphi 0, %s116
    %s140 = sphi 0, %s142
    %s143 = sphi 0, %s140
    %s144 = sphi 0, %s143
    %s160 = sphi 0, %s144
  $region4: #{conv_block_forward.2} parent=0 // loop_header_branch
    %14 = sbr.rel (%p12) target = $region8
  $region5: #{conv_block_forward.2} parent=0 // loop_body
    %s16 = ssub.s32 %s11, 1
    %s17 = ssub.s32 %s11, 2
    %s24 = sadd.s32 1, %s19
    %p25 = scmp.ge.s32.totalorder %s24, 1
    %s26 = scalar_select %p25, 0, %s24
    %s27 = sadd.s32 1, %s18
    %s28 = scalar_select %p25, %s27, %s18
    %p29 = scmp.ge.s32.totalorder %s28, 2
    %s30 = scalar_select %p29, 0, %s28
    %s31 = ssub.s32 %s18, %s30
    %s32 = ssub.s32 %s19, %s26
    %s33 = sor.u32 %s31, %s32
    %p34 = scmp.eq.s32.totalorder %s33, 0
    %s36 = sadd.s32 %s35, 1
    %s37 = scalar_select %p34, %s35, %s36
    %p40 = pneg %p34
    %p41 = scmp.eq.s32.totalorder %s11, 1
    %p42 = por %p40, %p41
    %p43 = scmp.ne.s32.totalorder %s35, %s38
    %p44 = scmp.eq.s32.totalorder %s11, 0
    %p45 = por %p43, %p44
    %p46 = scmp.ne.s32.totalorder %s35, %s38
    %p47 = scmp.eq.s32.totalorder %s16, 1
    %p48 = por %p46, %p47
    %p49 = scmp.ne.s32.totalorder %s38, %s39
    %p50 = scmp.eq.s32.totalorder %s16, 0
    %p51 = por %p49, %p50
    %p52 = scmp.ne.s32.totalorder %s38, %s39
    %p53 = scmp.eq.s32.totalorder %s17, 1
    %p54 = por %p52, %p53
    %p56 = scmp.ne.s32.totalorder %s39, %s55
    %p57 = scmp.eq.s32.totalorder %s17, 0
    %p58 = por %p56, %p57
    %s60 = sadd.s32 %s59, 1
    %p63 = scmp.eq.s32.totalorder %s11, 1
    %p64 = scmp.ne.s32.totalorder %s59, %s61
    %p65 = scmp.eq.s32.totalorder %s11, 0
    %p66 = por %p64, %p65
    %p67 = scmp.ne.s32.totalorder %s59, %s61
    %p68 = scmp.eq.s32.totalorder %s16, 1
    %p69 = por %p67, %p68
    %p70 = scmp.ne.s32.totalorder %s61, %s62
    %p71 = scmp.eq.s32.totalorder %s16, 0
    %p72 = por %p70, %p71
    %p73 = scmp.ne.s32.totalorder %s61, %s62
    %p74 = scmp.eq.s32.totalorder %s17, 1
    %p75 = por %p73, %p74
    %p77 = scmp.ne.s32.totalorder %s62, %s76
    %p78 = scmp.eq.s32.totalorder %s17, 0
    %p79 = por %p77, %p78
    %s80 = ssub.s32 %s18, %s30
    %s81 = ssub.s32 %s19, %s26
    %s82 = sor.u32 %s80, %s81
    %p83 = scmp.eq.s32.totalorder %s82, 0
    %s85 = sadd.s32 %s84, 1
    %s86 = scalar_select %p83, %s84, %s85
    %p89 = pneg %p83
    %p90 = scmp.eq.s32.totalorder %s11, 1
    %p91 = por %p89, %p90
    %p92 = scmp.ne.s32.totalorder %s84, %s87
    %p93 = scmp.eq.s32.totalorder %s11, 0
    %p94 = por %p92, %p93
    %p95 = scmp.ne.s32.totalorder %s84, %s87
    %p96 = scmp.eq.s32.totalorder %s16, 1
    %p97 = por %p95, %p96
    %p98 = scmp.ne.s32.totalorder %s87, %s88
    %p99 = scmp.eq.s32.totalorder %s16, 0
    %p100 = por %p98, %p99
    %p101 = scmp.ne.s32.totalorder %s87, %s88
    %p102 = scmp.eq.s32.totalorder %s17, 1
    %p103 = por %p101, %p102
    %p105 = scmp.ne.s32.totalorder %s88, %s104
    %p106 = scmp.eq.s32.totalorder %s17, 0
    %p107 = por %p105, %p106
    %s108 = ssub.s32 %s18, %s30
    %s109 = ssub.s32 %s19, %s26
    %s110 = sor.u32 %s108, %s109
    %p111 = scmp.eq.s32.totalorder %s110, 0
    %s113 = sadd.s32 %s112, 1
    %s114 = scalar_select %p111, %s112, %s113
    %p117 = pneg %p111
    %p118 = scmp.eq.s32.totalorder %s11, 1
    %p119 = por %p117, %p118
    %p120 = scmp.ne.s32.totalorder %s112, %s115
    %p121 = scmp.eq.s32.totalorder %s11, 0
    %p122 = por %p120, %p121
    %p123 = scmp.ne.s32.totalorder %s112, %s115
    %p124 = scmp.eq.s32.totalorder %s16, 1
    %p125 = por %p123, %p124
    %p126 = scmp.ne.s32.totalorder %s115, %s116
    %p127 = scmp.eq.s32.totalorder %s16, 0
    %p128 = por %p126, %p127
    %p129 = scmp.ne.s32.totalorder %s115, %s116
    %p130 = scmp.eq.s32.totalorder %s17, 1
    %p131 = por %p129, %p130
    %p133 = scmp.ne.s32.totalorder %s116, %s132
    %p134 = scmp.eq.s32.totalorder %s17, 0
    %p135 = por %p133, %p134
    %s136 = ssub.s32 %s18, %s30
    %s137 = ssub.s32 %s19, %s26
    %s138 = sor.u32 %s136, %s137
    %p139 = scmp.eq.s32.totalorder %s138, 0
    %s141 = sadd.s32 %s140, 1
    %s142 = scalar_select %p139, %s140, %s141
    %p145 = pneg %p139
    %p146 = scmp.eq.s32.totalorder %s11, 1
    %p147 = por %p145, %p146
    %p148 = scmp.ne.s32.totalorder %s140, %s143
    %p149 = scmp.eq.s32.totalorder %s11, 0
    %p150 = por %p148, %p149
    %p151 = scmp.ne.s32.totalorder %s140, %s143
    %p152 = scmp.eq.s32.totalorder %s16, 1
    %p153 = por %p151, %p152
    %p154 = scmp.ne.s32.totalorder %s143, %s144
    %p155 = scmp.eq.s32.totalorder %s16, 0
    %p156 = por %p154, %p155
    %p157 = scmp.ne.s32.totalorder %s143, %s144
    %p158 = scmp.eq.s32.totalorder %s17, 1
    %p159 = por %p157, %p158
    %p161 = scmp.ne.s32.totalorder %s144, %s160
    %p162 = scmp.eq.s32.totalorder %s17, 0
    %p163 = por %p161, %p162
    %p164 = scmp.le.s32.totalorder 1, %s11
    %p165 = scmp.lt.s32.totalorder %s11, 3
    %p166 = pnand %p164, %p165
    %p167 = pneg %p166
    // Predicated region
    $region9: #{conv_block_forward.2} parent=5 // pred_check
      _
    $region10: #{conv_block_forward.2} parent=5 // pred_check_branch
      %169 = sbr.rel (%p166) target = $region12
    $region11: #{conv_block_forward.2} parent=5 // pred_region
      %s170 = ssub.s32 %s11, 1
      // Predicated region
      $region13: #{conv_block_forward.2} parent=11 // pred_check
        %p171 = pneg %p72
      $region14: #{conv_block_forward.2} parent=11 // pred_check_branch
        %173 = sbr.rel (%p171) target = $region16
      $region15: #{conv_block_forward.2} parent=11 // pred_region
        _
      $region16: #{conv_block_forward.2} parent=11 // pred_fallthru
        _
    $region12: #{conv_block_forward.2} parent=5 // pred_fallthru
      _
    %p174 = scmp.lt.s32.totalorder %s11, 2
    // Predicated region
    $region17: #{conv_block_forward.2} parent=5 // pred_check
      %p175 = pneg %p174
    $region18: #{conv_block_forward.2} parent=5 // pred_check_branch
      %177 = sbr.rel (%p175) target = $region20
    $region19: #{conv_block_forward.2} parent=5 // pred_region
      // Predicated region
      $region21: #{conv_block_forward.2} parent=19 // pred_check
        %p178 = pneg %p45
      $region22: #{conv_block_forward.2} parent=19 // pred_check_branch
        %180 = sbr.rel (%p178) target = $region24
      $region23: #{conv_block_forward.2} parent=19 // pred_region
        %s181 = smul.u32 2, %s19
        %p182 = scmp.lt.s32.totalorder %s18, 1
        %s183 = scalar_select %p182, %s18, 1
        %p184 = scmp.lt.s32.totalorder %s181, 1
        %s185 = scalar_select %p184, %s181, 1
        %s186 = smul.addr %s183, 6
        %s187 = sadd.s32 %s185, %s186
        %s188 = smul.addr %s187, 8
        %s189 = scalar_lea.vmem %s0, %s188
        %s190 = smul.u32 2, %s19
      $region24: #{conv_block_forward.2} parent=19 // pred_fallthru
        _
    $region20: #{conv_block_forward.2} parent=5 // pred_fallthru
      _
    %p191 = scmp.le.s32.totalorder 1, %s11
    %p192 = scmp.lt.s32.totalorder %s11, 3
    %p193 = pnand %p191, %p192
    %p194 = pneg %p193
    // Predicated region
    $region25: #{conv_block_forward.2} parent=5 // pred_check
      _
    $region26: #{conv_block_forward.2} parent=5 // pred_check_branch
      %196 = sbr.rel (%p193) target = $region28
    $region27: #{conv_block_forward.2} parent=5 // pred_region
      %s197 = ssub.s32 %s11, 1
      %s198 = smul.u32 2, %s21
      %p199 = scmp.lt.s32.totalorder %s20, 1
      %s200 = scalar_select %p199, %s20, 1
      %p201 = scmp.lt.s32.totalorder %s198, 1
      %s202 = scalar_select %p201, %s198, 1
      %s203 = smul.addr %s200, 6
      %s204 = sadd.s32 %s202, %s203
      %s205 = smul.addr %s204, 8
      %s206 = scalar_lea.vmem %s0, %s205
      %p207 = pneg %p51
      %p208 = pneg %p48
      %p209 = pneg %p72
      %p210 = pneg %p69
      %p211 = pneg %p100
      %p212 = pneg %p97
      %s213 = smul.u32 2, %s21
      %p214 = scmp.lt.s32.totalorder %s20, 1
      %s215 = scalar_select %p214, %s20, 1
      %p216 = scmp.lt.s32.totalorder %s213, 1
      %s217 = scalar_select %p216, %s213, 1
      %s218 = smul.addr %s215, 2
      %s219 = sadd.s32 %s217, %s218
      %s220 = smul.addr %s219, 8
      %s221 = scalar_lea.vmem %s2, %s220
      %p222 = pneg %p128
      %p223 = pneg %p125
      %p224 = scmp.lt.s32.totalorder %s20, 1
      %s225 = scalar_select %p224, %s20, 1
      %p226 = scmp.lt.s32.totalorder %s21, 0
      %s227 = scalar_select %p226, %s21, 0
      %s228 = sadd.s32 %s227, %s225
      %s229 = smul.addr %s228, 8
      %s230 = scalar_lea.vmem %s3, %s229
      %p231 = pneg %p156
      %p232 = pneg %p153
      %p233 = scmp.lt.s32.totalorder %s20, 1
      %s234 = scalar_select %p233, %s20, 1
      %p235 = scmp.lt.s32.totalorder %s21, 0
      %s236 = scalar_select %p235, %s21, 0
      %s237 = sadd.s32 %s236, %s234
      %s238 = smul.addr %s237, 8
      %s239 = scalar_lea.vmem %s4, %s238
      %s240 = smul.u32 2, %s21
      %p241 = scmp.lt.s32.totalorder %s20, 1
      %s242 = scalar_select %p241, %s20, 1
      %p243 = scmp.lt.s32.totalorder %s240, 1
      %s244 = scalar_select %p243, %s240, 1
      %s245 = smul.addr %s242, 6
      %s246 = sadd.s32 %s244, %s245
      %s247 = smul.addr %s246, 8
      %s248 = scalar_lea.vmem %s0, %s247
      %s249 = smul.u32 2, %s21
      %s250 = smul.u32 2, %s21
      %p251 = scmp.lt.s32.totalorder %s20, 1
      %s252 = scalar_select %p251, %s20, 1
      %p253 = scmp.lt.s32.totalorder %s250, 1
      %s254 = scalar_select %p253, %s250, 1
      %s255 = smul.addr %s252, 2
      %s256 = sadd.s32 %s254, %s255
      %s257 = smul.addr %s256, 8
      %s258 = scalar_lea.vmem %s2, %s257
      %s259 = smul.u32 2, %s21
      %p260 = scmp.lt.s32.totalorder %s20, 1
      %s261 = scalar_select %p260, %s20, 1
      %p262 = scmp.lt.s32.totalorder %s21, 0
      %s263 = scalar_select %p262, %s21, 0
      %s264 = sadd.s32 %s263, %s261
      %s265 = smul.addr %s264, 8
      %s266 = scalar_lea.vmem %s3, %s265
      %p267 = scmp.lt.s32.totalorder %s20, 1
      %s268 = scalar_select %p267, %s20, 1
      %p269 = scmp.lt.s32.totalorder %s21, 0
      %s270 = scalar_select %p269, %s21, 0
      %s271 = sadd.s32 %s270, %s268
      %s272 = smul.addr %s271, 8
      %s273 = scalar_lea.vmem %s4, %s272
      %v274 = vld [vmem:[%s248] sm:$0xff]
      %v275 = vld [vmem:[%s248 + $0x8] sm:$0xff]
      %v276 = vld [vmem:[%s1] sm:$0xff]
      %v277 = vld [vmem:[%s1 + $0x8] sm:$0xff]
      %v278 = vld [vmem:[%s1 + $0x10] sm:$0xff]
      %v279 = vld [vmem:[%s1 + $0x18] sm:$0xff]
      %v280 = vld [vmem:[%s1 + $0x20] sm:$0xff]
      %v281 = vld [vmem:[%s1 + $0x28] sm:$0xff]
      %v282 = vld [vmem:[%s1 + $0x30] sm:$0xff]
      %v283 = vld [vmem:[%s1 + $0x38] sm:$0xff]
      %v284 = vld [vmem:[%s1 + $0x40] sm:$0xff]
      %s285 = scalar_lea.vmem %s248, 16
      %v286 = vld [vmem:[%s285] sm:$0xff]
      %v287 = vld [vmem:[%s285 + $0x8] sm:$0xff]
      %s288 = scalar_lea.vmem %s1, 72
      %v289 = vld [vmem:[%s288] sm:$0xff]
      %v290 = vld [vmem:[%s288 + $0x8] sm:$0xff]
      %v291 = vld [vmem:[%s288 + $0x10] sm:$0xff]
      %v292 = vld [vmem:[%s288 + $0x18] sm:$0xff]
      %v293 = vld [vmem:[%s288 + $0x20] sm:$0xff]
      %v294 = vld [vmem:[%s288 + $0x28] sm:$0xff]
      %v295 = vld [vmem:[%s288 + $0x30] sm:$0xff]
      %v296 = vld [vmem:[%s288 + $0x38] sm:$0xff]
      %v297 = vld [vmem:[%s288 + $0x40] sm:$0xff]
      %vm298 = vcmask 588800
      %v300 = vsel %vm298, %v286, 0
      %v303 = vsel %vm298, %v287, 0
      %305 = vmatpush.msra.mxu0 0.0
      %306 = vmatpush.msra.mxu0 0.0
      %307 = vmatpush.msra.mxu0 0.0
      %308 = vmatpush.msra.mxu0 0.0
      %309 = vmatpush.msra.mxu0 0.0
      %310 = vmatpush.msra.mxu0 0.0
      %311 = vmatpush.msra.mxu0 0.0
      %312 = vmatpush.msra.mxu0 %v297
      %313 = vmatpush.msra.mxu0 %v296
      %314 = vmatpush.msra.mxu0 %v295
      %315 = vmatpush.msra.mxu0 %v294
      %316 = vmatpush.msra.mxu0 %v293
      %317 = vmatpush.msra.mxu0 %v292
      %318 = vmatpush.msra.mxu0 %v291
      %319 = vmatpush.msra.mxu0 %v290
      %320 = vmatpush.msra.mxu0 %v289
      %321 = vmatmul.f32.gmra.mxu0 %v300
      %v322 = vpop.f32.mrf.mxu0
      %v323 = vadd.f32 0.0, %v322
      %324 = vmatmul.f32.gmra.mxu0 %v303
      %v325 = vpop.f32.mrf.mxu0
      %v326 = vadd.f32 0.0, %v325
      %327 = vdwg.mxu0
      %v329 = vsel %vm298, %v274, 0
      %v332 = vsel %vm298, %v275, 0
      %334 = vmatpush.msra.mxu0 0.0
      %335 = vmatpush.msra.mxu0 0.0
      %336 = vmatpush.msra.mxu0 0.0
      %337 = vmatpush.msra.mxu0 0.0
      %338 = vmatpush.msra.mxu0 0.0
      %339 = vmatpush.msra.mxu0 0.0
      %340 = vmatpush.msra.mxu0 0.0
      %341 = vmatpush.msra.mxu0 %v284
      %342 = vmatpush.msra.mxu0 %v283
      %343 = vmatpush.msra.mxu0 %v282
      %344 = vmatpush.msra.mxu0 %v281
      %345 = vmatpush.msra.mxu0 %v280
      %346 = vmatpush.msra.mxu0 %v279
      %347 = vmatpush.msra.mxu0 %v278
      %348 = vmatpush.msra.mxu0 %v277
      %349 = vmatpush.msra.mxu0 %v276
      %350 = vmatmul.f32.gmra.mxu0 %v329
      %v351 = vpop.f32.mrf.mxu0
      %v352 = vadd.f32 %v323, %v351
      %353 = vmatmul.f32.gmra.mxu0 %v332
      %v354 = vpop.f32.mrf.mxu0
      %v355 = vadd.f32 %v326, %v354
      %356 = vdwg.mxu0
      %s357 = scalar_lea.vmem %s248, 32
      %v358 = vld [vmem:[%s357] sm:$0xff]
      %v359 = vld [vmem:[%s357 + $0x8] sm:$0xff]
      %s360 = scalar_lea.vmem %s1, 144
      %v361 = vld [vmem:[%s360] sm:$0xff]
      %v362 = vld [vmem:[%s360 + $0x8] sm:$0xff]
      %v363 = vld [vmem:[%s360 + $0x10] sm:$0xff]
      %v364 = vld [vmem:[%s360 + $0x18] sm:$0xff]
      %v365 = vld [vmem:[%s360 + $0x20] sm:$0xff]
      %v366 = vld [vmem:[%s360 + $0x28] sm:$0xff]
      %v367 = vld [vmem:[%s360 + $0x30] sm:$0xff]
      %v368 = vld [vmem:[%s360 + $0x38] sm:$0xff]
      %v369 = vld [vmem:[%s360 + $0x40] sm:$0xff]
      %v371 = vsel %vm298, %v358, 0
      %v374 = vsel %vm298, %v359, 0
      %376 = vmatpush.msra.mxu0 0.0
      %377 = vmatpush.msra.mxu0 0.0
      %378 = vmatpush.msra.mxu0 0.0
      %379 = vmatpush.msra.mxu0 0.0
      %380 = vmatpush.msra.mxu0 0.0
      %381 = vmatpush.msra.mxu0 0.0
      %382 = vmatpush.msra.mxu0 0.0
      %383 = vmatpush.msra.mxu0 %v369
      %384 = vmatpush.msra.mxu0 %v368
      %385 = vmatpush.msra.mxu0 %v367
      %386 = vmatpush.msra.mxu0 %v366
      %387 = vmatpush.msra.mxu0 %v365
      %388 = vmatpush.msra.mxu0 %v364
      %389 = vmatpush.msra.mxu0 %v363
      %390 = vmatpush.msra.mxu0 %v362
      %391 = vmatpush.msra.mxu0 %v361
      %392 = vmatmul.f32.gmra.mxu0 %v371
      %v393 = vpop.f32.mrf.mxu0
      %v394 = vadd.f32 0.0, %v393
      %395 = vmatmul.f32.gmra.mxu0 %v374
      %v396 = vpop.f32.mrf.mxu0
      %v397 = vadd.f32 0.0, %v396
      %398 = vdwg.mxu0
      %v399 = vadd.f32 %v352, %v394
      %v400 = vadd.f32 %v355, %v397
      %401 = vst [vmem:[%s258] sm:$0xff] %v399
      %402 = vst [vmem:[%s258 + $0x8] sm:$0xff] %v400
      %v403 = vadd.f32 %v399, %v400
      %v404 = vmul.f32 %v399, %v399
      %v405 = vmul.f32 %v400, %v400
      %v406 = vadd.f32 %v404, %v405
      %407 = vst [vmem:[%s266] sm:$0xff] %v403
      %408 = vst [vmem:[%s273] sm:$0xff] %v406
      %s409 = smul.u32 2, %s21
      %p410 = scmp.lt.s32.totalorder %s20, 1
      %s411 = scalar_select %p410, %s20, 1
      %p412 = scmp.lt.s32.totalorder %s409, 1
      %s413 = scalar_select %p412, %s409, 1
      %s414 = smul.addr %s411, 2
      %s415 = sadd.s32 %s413, %s414
      %s416 = smul.addr %s415, 8
      %s417 = scalar_lea.vmem %s2, %s416
      %p418 = scmp.lt.s32.totalorder %s20, 1
      %s419 = scalar_select %p418, %s20, 1
      %p420 = scmp.lt.s32.totalorder %s21, 0
      %s421 = scalar_select %p420, %s21, 0
      %s422 = sadd.s32 %s421, %s419
      %s423 = smul.addr %s422, 8
      %s424 = scalar_lea.vmem %s3, %s423
      %p425 = scmp.lt.s32.totalorder %s20, 1
      %s426 = scalar_select %p425, %s20, 1
      %p427 = scmp.lt.s32.totalorder %s21, 0
      %s428 = scalar_select %p427, %s21, 0
      %s429 = sadd.s32 %s428, %s426
      %s430 = smul.addr %s429, 8
      %s431 = scalar_lea.vmem %s4, %s430
      // Predicated region
      $region29: #{conv_block_forward.2} parent=27 // pred_check
        %p432 = pneg %p97
      $region30: #{conv_block_forward.2} parent=27 // pred_check_branch
        %434 = sbr.rel (%p432) target = $region32
      $region31: #{conv_block_forward.2} parent=27 // pred_region
        %s435 = smul.u32 2, %s21
      $region32: #{conv_block_forward.2} parent=27 // pred_fallthru
        _
      // Predicated region
      $region33: #{conv_block_forward.2} parent=27 // pred_check
        %p436 = pneg %p125
      $region34: #{conv_block_forward.2} parent=27 // pred_check_branch
        %438 = sbr.rel (%p436) target = $region36
      $region35: #{conv_block_forward.2} parent=27 // pred_region
        _
      $region36: #{conv_block_forward.2} parent=27 // pred_fallthru
        _
      // Predicated region
      $region37: #{conv_block_forward.2} parent=27 // pred_check
        %p439 = pneg %p153
      $region38: #{conv_block_forward.2} parent=27 // pred_check_branch
        %441 = sbr.rel (%p439) target = $region40
      $region39: #{conv_block_forward.2} parent=27 // pred_region
        _
      $region40: #{conv_block_forward.2} parent=27 // pred_fallthru
        _
    $region28: #{conv_block_forward.2} parent=5 // pred_fallthru
      _
    %p442 = scmp.le.s32.totalorder 2, %s11
    // Predicated region
    $region41: #{conv_block_forward.2} parent=5 // pred_check
      %p443 = pneg %p442
    $region42: #{conv_block_forward.2} parent=5 // pred_check_branch
      %445 = sbr.rel (%p443) target = $region44
    $region43: #{conv_block_forward.2} parent=5 // pred_region
      %s446 = ssub.s32 %s11, 2
      // Predicated region
      $region45: #{conv_block_forward.2} parent=43 // pred_check
        %p447 = pneg %p103
      $region46: #{conv_block_forward.2} parent=43 // pred_check_branch
        %449 = sbr.rel (%p447) target = $region48
      $region47: #{conv_block_forward.2} parent=43 // pred_region
        %s450 = smul.u32 2, %s23
        %p451 = scmp.lt.s32.totalorder %s22, 1
        %s452 = scalar_select %p451, %s22, 1
        %p453 = scmp.lt.s32.totalorder %s450, 1
        %s454 = scalar_select %p453, %s450, 1
        %s455 = smul.addr %s452, 2
        %s456 = sadd.s32 %s454, %s455
        %s457 = smul.addr %s456, 8
        %s458 = scalar_lea.vmem %s2, %s457
      $region48: #{conv_block_forward.2} parent=43 // pred_fallthru
        _
      // Predicated region
      $region49: #{conv_block_forward.2} parent=43 // pred_check
        %p459 = pneg %p131
      $region50: #{conv_block_forward.2} parent=43 // pred_check_branch
        %461 = sbr.rel (%p459) target = $region52
      $region51: #{conv_block_forward.2} parent=43 // pred_region
        %p462 = scmp.lt.s32.totalorder %s22, 1
        %s463 = scalar_select %p462, %s22, 1
        %p464 = scmp.lt.s32.totalorder %s23, 0
        %s465 = scalar_select %p464, %s23, 0
        %s466 = sadd.s32 %s465, %s463
        %s467 = smul.addr %s466, 8
        %s468 = scalar_lea.vmem %s3, %s467
      $region52: #{conv_block_forward.2} parent=43 // pred_fallthru
        _
      // Predicated region
      $region53: #{conv_block_forward.2} parent=43 // pred_check
        %p469 = pneg %p159
      $region54: #{conv_block_forward.2} parent=43 // pred_check_branch
        %471 = sbr.rel (%p469) target = $region56
      $region55: #{conv_block_forward.2} parent=43 // pred_region
        %p472 = scmp.lt.s32.totalorder %s22, 1
        %s473 = scalar_select %p472, %s22, 1
        %p474 = scmp.lt.s32.totalorder %s23, 0
        %s475 = scalar_select %p474, %s23, 0
        %s476 = sadd.s32 %s475, %s473
        %s477 = smul.addr %s476, 8
        %s478 = scalar_lea.vmem %s4, %s477
      $region56: #{conv_block_forward.2} parent=43 // pred_fallthru
        _
    $region44: #{conv_block_forward.2} parent=5 // pred_fallthru
      _
  $region6: #{conv_block_forward.2} parent=0 // loop_footer
    %s15 = sadd.s32 1, %s11
  $region7: #{conv_block_forward.2} parent=0 // loop_footer_branch
    %10 = sbr.rel target = $region3
  $region8: #{conv_block_forward.2} parent=0 // loop_exit
    _

// kernel: tile.18
$region0: #{tile.18}
  #allocation0 [shape = 's32[1]{0}', space=sflag, size = 0x4, scoped, tag = 'scoped memory for tile.18']
  %s0 = inlined_call_operand.vmem [shape: f32[8], index: 0, kind: input, shape index: {}]
  %s1 = inlined_call_operand.vmem [shape: f32[16,8], index: 1, kind: output, shape index: {}]
  // Predicated region
  $region2: #{tile.18} parent=0 // pred_check
    _
  $region3: #{tile.18} parent=0 // pred_check_branch
    %3 = sbr.rel (0) target = $region5
  $region4: #{tile.18} parent=0 // pred_region
    _
  $region5: #{tile.18} parent=0 // pred_fallthru
    _
  %v4 = vld [vmem:[%s0] ss:$0 sm:$0xff]
  %5 = vst [vmem:[%s1] sm:$0xff] %v4
  %s6 = scalar_lea.vmem %s1, 8
  %7 = vst [vmem:[%s6] sm:$0xff] %v4

// kernel: tile.19
$region0: #{tile.19}
  %s0 = inlined_call_operand.vmem [shape: f32[16,8], index: 0, kind: input, shape index: {}]
  %s1 = inlined_call_operand.vmem [shape: f32[1,128], index: 1, kind: output, shape index: {}]
  $region1: #{tile.19} parent=0
    #allocation0 [shape = 'u8[4096]{0}', space=vmem, size = 0x1000, scoped, tag = 'scoped mem for output reshape']
    %v2 = vld [vmem:[%s0] sm:$0x1]
    %vm3 = vcmask 64512
    %4 = vst.msk [vmem:[#allocation0] sm:$0x1] %vm3, %v2
    %s5 = scalar_lea.vmem %s0, 15
    %v6 = vld [vmem:[%s5] sm:$0x1]
    %7 = vrot.lane.b32.xlu0 %v6, 120
    %v8 = vpop.permute.xlu0 %7
    %vm9 = vcmask 1048512
    %10 = vst.msk [vmem:[#allocation0] sm:$0x1] %vm9, %v8
    %s11 = scalar_lea.vmem %s0, 14
    %v12 = vld [vmem:[%s11] sm:$0x1]
    %13 = vrot.lane.b32.xlu0 %v12, 112
    %v14 = vpop.permute.xlu0 %13
    %vm15 = vcmask 982912
    %16 = vst.msk [vmem:[#allocation0] sm:$0x1] %vm15, %v14
    %s17 = scalar_lea.vmem %s0, 13
    %v18 = vld [vmem:[%s17] sm:$0x1]
    %19 = vrot.lane.b32.xlu0 %v18, 104
    %v20 = vpop.permute.xlu0 %19
    %vm21 = vcmask 917312
    %22 = vst.msk [vmem:[#allocation0] sm:$0x1] %vm21, %v20
    %s23 = scalar_lea.vmem %s0, 12
    %v24 = vld [vmem:[%s23] sm:$0x1]
    %25 = vrot.lane.b32.xlu0 %v24, 96
    %v26 = vpop.permute.xlu0 %25
    %vm27 = vcmask 851712
    %28 = vst.msk [vmem:[#allocation0] sm:$0x1] %vm27, %v26
    %s29 = scalar_lea.vmem %s0, 11
    %v30 = vld [vmem:[%s29] sm:$0x1]
    %31 = vrot.lane.b32.xlu0 %v30, 88
    %v32 = vpop.permute.xlu0 %31
    %vm33 = vcmask 786112
    %34 = vst.msk [vmem:[#allocation0] sm:$0x1] %vm33, %v32
    %s35 = scalar_lea.vmem %s0, 10
    %v36 = vld [vmem:[%s35] sm:$0x1]
    %37 = vrot.lane.b32.xlu0 %v36, 80
    %v38 = vpop.permute.xlu0 %37
    %vm39 = vcmask 720512
    %40 = vst.msk [vmem:[#allocation0] sm:$0x1] %vm39, %v38
    %s41 = scalar_lea.vmem %s0, 9
    %v42 = vld [vmem:[%s41] sm:$0x1]
    %43 = vrot.lane.b32.xlu0 %v42, 72
    %v44 = vpop.permute.xlu0 %43
    %vm45 = vcmask 654912
    %46 = vst.msk [vmem:[#allocation0] sm:$0x1] %vm45, %v44
    %s47 = scalar_lea.vmem %s0, 8
    %v48 = vld [vmem:[%s47] sm:$0x1]
    %49 = vrot.lane.b32.xlu0 %v48, 64
    %v50 = vpop.permute.xlu0 %49
    %vm51 = vcmask 589312
    %52 = vst.msk [vmem:[#allocation0] sm:$0x1] %vm51, %v50
    %s53 = scalar_lea.vmem %s0, 7
    %v54 = vld [vmem:[%s53] sm:$0x1]
    %55 = vrot.lane.b32.xlu0 %v54, 56
    %v56 = vpop.permute.xlu0 %55
    %vm57 = vcmask 523712
    %58 = vst.msk [vmem:[#allocation0] sm:$0x1] %vm57, %v56
    %s59 = scalar_lea.vmem %s0, 6
    %v60 = vld [vmem:[%s59] sm:$0x1]
    %61 = vrot.lane.b32.xlu0 %v60, 48
    %v62 = vpop.permute.xlu0 %61
    %vm63 = vcmask 458112
    %64 = vst.msk [vmem:[#allocation0] sm:$0x1] %vm63, %v62
    %s65 = scalar_lea.vmem %s0, 5
    %v66 = vld [vmem:[%s65] sm:$0x1]
    %67 = vrot.lane.b32.xlu0 %v66, 40
    %v68 = vpop.permute.xlu0 %67
    %vm69 = vcmask 392512
    %70 = vst.msk [vmem:[#allocation0] sm:$0x1] %vm69, %v68
    %s71 = scalar_lea.vmem %s0, 4
    %v72 = vld [vmem:[%s71] sm:$0x1]
    %73 = vrot.lane.b32.xlu0 %v72, 32
    %v74 = vpop.permute.xlu0 %73
    %vm75 = vcmask 326912
    %76 = vst.msk [vmem:[#allocation0] sm:$0x1] %vm75, %v74
    %s77 = scalar_lea.vmem %s0, 3
    %v78 = vld [vmem:[%s77] sm:$0x1]
    %79 = vrot.lane.b32.xlu0 %v78, 24
    %v80 = vpop.permute.xlu0 %79
    %vm81 = vcmask 261312
    %82 = vst.msk [vmem:[#allocation0] sm:$0x1] %vm81, %v80
    %s83 = scalar_lea.vmem %s0, 2
    %v84 = vld [vmem:[%s83] sm:$0x1]
    %85 = vrot.lane.b32.xlu0 %v84, 16
    %v86 = vpop.permute.xlu0 %85
    %vm87 = vcmask 195712
    %88 = vst.msk [vmem:[#allocation0] sm:$0x1] %vm87, %v86
    %s89 = scalar_lea.vmem %s0, 1
    %v90 = vld [vmem:[%s89] sm:$0x1]
    %91 = vrot.lane.b32.xlu0 %v90, 8
    %v92 = vpop.permute.xlu0 %91
    %vm93 = vcmask 130112
    %94 = vst.msk [vmem:[#allocation0] sm:$0x1] %vm93, %v92
    %s96 = ssub.s32 2, 1
    %v97 = vld [vmem:[#allocation0] sm:%s96]
    %s99 = ssub.s32 2, 1
    %100 = vst [vmem:[%s1] sm:%s99] %v97

// kernel: conv_block_forward.3
$region0: #{conv_block_forward.3}
  #allocation0 [shape = 'u32[]', space=smem, size = 0x4, offset = 0x4, fixed_abs, tag = 'smem constant byte address 0x4 - core index']
  #allocation1 [shape = 'u32[72,128]{1,0:T(1,128)}', space=vmem, size = 0x9000, scoped, tag = 'internal scratch']
  %s0 = inlined_call_operand.vmem [shape: f32[2,16,128], index: 0, kind: input, shape index: {}]
  %s1 = inlined_call_operand.vmem [shape: f32[1,128], index: 1, kind: input, shape index: {}]
  %s2 = inlined_call_operand.vmem [shape: f32[1,128], index: 2, kind: input, shape index: {}]
  %s3 = inlined_call_operand.vmem [shape: f32[2,8,8,8], index: 3, kind: output, shape index: {}]
  %s4 = sld [smem:[#allocation0]]
  $region45: #{conv_block_forward.3} parent=0
    _
  %s6 = ssub.s32 1, %s4
  %s7 = scalar_select 0, %s6, %s4
  loop: start=0, step=1, limit=4
  $region2: #{conv_block_forward.3} parent=0 // loop_pre_header
    _
  $region3: #{conv_block_forward.3} parent=0 // loop_header
    %s9 = sphi 0, %s13
    %p10 = scmp.ge.s32.totalorder %s9, 4
    %s16 = sphi 0, %s28
    %s17 = sphi 0, %s24
    %s18 = sphi 0, %s16
    %s19 = sphi 0, %s17
    %s20 = sphi 0, %s18
    %s21 = sphi 0, %s19
    %s33 = sphi 0, %s35
    %s36 = sphi 0, %s33
    %s37 = sphi 0, %s36
    %s53 = sphi 0, %s37
    %s57 = sphi 0, %s57
    %s59 = sphi 0, %s57
    %s60 = sphi 0, %s59
    %s74 = sphi 0, %s60
    %s78 = sphi 0, %s78
    %s80 = sphi 0, %s78
    %s81 = sphi 0, %s80
    %s95 = sphi 0, %s81
    %s103 = sphi 0, %s105
    %s106 = sphi 0, %s103
    %s107 = sphi 0, %s106
    %s123 = sphi 0, %s107
  $region4: #{conv_block_forward.3} parent=0 // loop_header_branch
    %12 = sbr.rel (%p10) target = $region8
  $region5: #{conv_block_forward.3} parent=0 // loop_body
    %s14 = ssub.s32 %s9, 1
    %s15 = ssub.s32 %s9, 2
    %s22 = sadd.s32 1, %s17
    %p23 = scmp.ge.s32.totalorder %s22, 1
    %s24 = scalar_select %p23, 0, %s22
    %s25 = sadd.s32 1, %s16
    %s26 = scalar_select %p23, %s25, %s16
    %p27 = scmp.ge.s32.totalorder %s26, 2
    %s28 = scalar_select %p27, 0, %s26
    %s29 = ssub.s32 %s16, %s28
    %s30 = ssub.s32 %s17, %s24
    %s31 = sor.u32 %s29, %s30
    %p32 = scmp.eq.s32.totalorder %s31, 0
    %s34 = sadd.s32 %s33, 1
    %s35 = scalar_select %p32, %s33, %s34
    %p38 = pneg %p32
    %p39 = scmp.eq.s32.totalorder %s9, 1
    %p40 = por %p38, %p39
    %p41 = scmp.ne.s32.totalorder %s33, %s36
    %p42 = scmp.eq.s32.totalorder %s9, 0
    %p43 = por %p41, %p42
    %p44 = scmp.ne.s32.totalorder %s33, %s36
    %p45 = scmp.eq.s32.totalorder %s14, 1
    %p46 = por %p44, %p45
    %p47 = scmp.ne.s32.totalorder %s36, %s37
    %p48 = scmp.eq.s32.totalorder %s14, 0
    %p49 = por %p47, %p48
    %p50 = scmp.ne.s32.totalorder %s36, %s37
    %p51 = scmp.eq.s32.totalorder %s15, 1
    %p52 = por %p50, %p51
    %p54 = scmp.ne.s32.totalorder %s37, %s53
    %p55 = scmp.eq.s32.totalorder %s15, 0
    %p56 = por %p54, %p55
    %s58 = sadd.s32 %s57, 1
    %p61 = scmp.eq.s32.totalorder %s9, 1
    %p62 = scmp.ne.s32.totalorder %s57, %s59
    %p63 = scmp.eq.s32.totalorder %s9, 0
    %p64 = por %p62, %p63
    %p65 = scmp.ne.s32.totalorder %s57, %s59
    %p66 = scmp.eq.s32.totalorder %s14, 1
    %p67 = por %p65, %p66
    %p68 = scmp.ne.s32.totalorder %s59, %s60
    %p69 = scmp.eq.s32.totalorder %s14, 0
    %p70 = por %p68, %p69
    %p71 = scmp.ne.s32.totalorder %s59, %s60
    %p72 = scmp.eq.s32.totalorder %s15, 1
    %p73 = por %p71, %p72
    %p75 = scmp.ne.s32.totalorder %s60, %s74
    %p76 = scmp.eq.s32.totalorder %s15, 0
    %p77 = por %p75, %p76
    %s79 = sadd.s32 %s78, 1
    %p82 = scmp.eq.s32.totalorder %s9, 1
    %p83 = scmp.ne.s32.totalorder %s78, %s80
    %p84 = scmp.eq.s32.totalorder %s9, 0
    %p85 = por %p83, %p84
    %p86 = scmp.ne.s32.totalorder %s78, %s80
    %p87 = scmp.eq.s32.totalorder %s14, 1
    %p88 = por %p86, %p87
    %p89 = scmp.ne.s32.totalorder %s80, %s81
    %p90 = scmp.eq.s32.totalorder %s14, 0
    %p91 = por %p89, %p90
    %p92 = scmp.ne.s32.totalorder %s80, %s81
    %p93 = scmp.eq.s32.totalorder %s15, 1
    %p94 = por %p92, %p93
    %p96 = scmp.ne.s32.totalorder %s81, %s95
    %p97 = scmp.eq.s32.totalorder %s15, 0
    %p98 = por %p96, %p97
    %s99 = ssub.s32 %s16, %s28
    %s100 = ssub.s32 %s17, %s24
    %s101 = sor.u32 %s99, %s100
    %p102 = scmp.eq.s32.totalorder %s101, 0
    %s104 = sadd.s32 %s103, 1
    %s105 = scalar_select %p102, %s103, %s104
    %p108 = pneg %p102
    %p109 = scmp.eq.s32.totalorder %s9, 1
    %p110 = por %p108, %p109
    %p111 = scmp.ne.s32.totalorder %s103, %s106
    %p112 = scmp.eq.s32.totalorder %s9, 0
    %p113 = por %p111, %p112
    %p114 = scmp.ne.s32.totalorder %s103, %s106
    %p115 = scmp.eq.s32.totalorder %s14, 1
    %p116 = por %p114, %p115
    %p117 = scmp.ne.s32.totalorder %s106, %s107
    %p118 = scmp.eq.s32.totalorder %s14, 0
    %p119 = por %p117, %p118
    %p120 = scmp.ne.s32.totalorder %s106, %s107
    %p121 = scmp.eq.s32.totalorder %s15, 1
    %p122 = por %p120, %p121
    %p124 = scmp.ne.s32.totalorder %s107, %s123
    %p125 = scmp.eq.s32.totalorder %s15, 0
    %p126 = por %p124, %p125
    %p127 = scmp.le.s32.totalorder 1, %s9
    %p128 = scmp.lt.s32.totalorder %s9, 3
    %p129 = pnand %p127, %p128
    %p130 = pneg %p129
    // Predicated region
    $region9: #{conv_block_forward.3} parent=5 // pred_check
      _
    $region10: #{conv_block_forward.3} parent=5 // pred_check_branch
      %132 = sbr.rel (%p129) target = $region12
    $region11: #{conv_block_forward.3} parent=5 // pred_region
      %s133 = ssub.s32 %s9, 1
      // Predicated region
      $region13: #{conv_block_forward.3} parent=11 // pred_check
        %p134 = pneg %p70
      $region14: #{conv_block_forward.3} parent=11 // pred_check_branch
        %136 = sbr.rel (%p134) target = $region16
      $region15: #{conv_block_forward.3} parent=11 // pred_region
        _
      $region16: #{conv_block_forward.3} parent=11 // pred_fallthru
        _
      // Predicated region
      $region17: #{conv_block_forward.3} parent=11 // pred_check
        %p137 = pneg %p91
      $region18: #{conv_block_forward.3} parent=11 // pred_check_branch
        %139 = sbr.rel (%p137) target = $region20
      $region19: #{conv_block_forward.3} parent=11 // pred_region
        _
      $region20: #{conv_block_forward.3} parent=11 // pred_fallthru
        _
    $region12: #{conv_block_forward.3} parent=5 // pred_fallthru
      _
    %p140 = scmp.lt.s32.totalorder %s9, 2
    // Predicated region
    $region21: #{conv_block_forward.3} parent=5 // pred_check
      %p141 = pneg %p140
    $region22: #{conv_block_forward.3} parent=5 // pred_check_branch
      %143 = sbr.rel (%p141) target = $region24
    $region23: #{conv_block_forward.3} parent=5 // pred_region
      // Predicated region
      $region25: #{conv_block_forward.3} parent=23 // pred_check
        %p144 = pneg %p43
      $region26: #{conv_block_forward.3} parent=23 // pred_check_branch
        %146 = sbr.rel (%p144) target = $region28
      $region27: #{conv_block_forward.3} parent=23 // pred_region
        %s147 = smul.u32 2, %s17
        %p148 = scmp.lt.s32.totalorder %s16, 1
        %s149 = scalar_select %p148, %s16, 1
        %p150 = scmp.lt.s32.totalorder %s147, 1
        %s151 = scalar_select %p150, %s147, 1
        %s152 = smul.addr %s149, 2
        %s153 = sadd.s32 %s151, %s152
        %s154 = smul.addr %s153, 8
        %s155 = scalar_lea.vmem %s0, %s154
        %s156 = smul.u32 2, %s17
      $region28: #{conv_block_forward.3} parent=23 // pred_fallthru
        _
    $region24: #{conv_block_forward.3} parent=5 // pred_fallthru
      _
    %p157 = scmp.le.s32.totalorder 1, %s9
    %p158 = scmp.lt.s32.totalorder %s9, 3
    %p159 = pnand %p157, %p158
    %p160 = pneg %p159
    // Predicated region
    $region29: #{conv_block_forward.3} parent=5 // pred_check
      _
    $region30: #{conv_block_forward.3} parent=5 // pred_check_branch
      %162 = sbr.rel (%p159) target = $region32
    $region31: #{conv_block_forward.3} parent=5 // pred_region
      %s163 = ssub.s32 %s9, 1
      %s164 = smul.u32 2, %s19
      %p165 = scmp.lt.s32.totalorder %s18, 1
      %s166 = scalar_select %p165, %s18, 1
      %p167 = scmp.lt.s32.totalorder %s164, 1
      %s168 = scalar_select %p167, %s164, 1
      %s169 = smul.addr %s166, 2
      %s170 = sadd.s32 %s168, %s169
      %s171 = smul.addr %s170, 8
      %s172 = scalar_lea.vmem %s0, %s171
      %p173 = pneg %p49
      %p174 = pneg %p46
      %p175 = pneg %p70
      %p176 = pneg %p67
      %p177 = pneg %p91
      %p178 = pneg %p88
      %p179 = pneg %p119
      %p180 = pneg %p116
      %s181 = smul.u32 8, %s19
      %p182 = scmp.lt.s32.totalorder %s18, 1
      %s183 = scalar_select %p182, %s18, 1
      %p184 = scmp.lt.s32.totalorder %s181, 7
      %s185 = scalar_select %p184, %s181, 7
      %s186 = smul.addr %s183, 8
      %s187 = sadd.s32 %s185, %s186
      %s188 = smul.addr %s187, 8
      %s189 = scalar_lea.vmem %s3, %s188
      %s190 = smul.u32 2, %s19
      %p191 = scmp.lt.s32.totalorder %s18, 1
      %s192 = scalar_select %p191, %s18, 1
      %p193 = scmp.lt.s32.totalorder %s190, 1
      %s194 = scalar_select %p193, %s190, 1
      %s195 = smul.addr %s192, 2
      %s196 = sadd.s32 %s194, %s195
      %s197 = smul.addr %s196, 8
      %s198 = scalar_lea.vmem %s0, %s197
      %s199 = smul.u32 2, %s19
      %s200 = smul.u32 8, %s19
      %p201 = scmp.lt.s32.totalorder %s18, 1
      %s202 = scalar_select %p201, %s18, 1
      %p203 = scmp.lt.s32.totalorder %s200, 7
      %s204 = scalar_select %p203, %s200, 7
      %s205 = smul.addr %s202, 8
      %s206 = sadd.s32 %s204, %s205
      %s207 = smul.addr %s206, 8
      %s208 = scalar_lea.vmem %s3, %s207
      %s209 = smul.u32 8, %s19
      %v210 = vld [vmem:[%s198] sm:$0xff]
      %v211 = vld [vmem:[%s198 + $0x8] sm:$0xff]
      %v212 = vld [vmem:[%s1] sm:$0x1]
      %v214 = vperm.slane %v212, 0
      %v216 = vmul.f32 %v210, %v214
      %v217 = vmul.f32 %v211, %v214
      %v218 = vld [vmem:[%s2] sm:$0x1]
      %v220 = vperm.slane %v218, 0
      %v222 = vadd.f32 %v216, %v220
      %v223 = vadd.f32 %v217, %v220
      %v224 = vmax.f32 %v222, 0.0
      %v225 = vmax.f32 %v223, 0.0
      %v228 = vrot.slane %v224, 2
      %v229 = vrot.slane %v224, 4
      %v230 = vrot.slane %v224, 6
      %v231 = vrot.slane %v225, 2
      %v232 = vrot.slane %v225, 4
      %v233 = vrot.slane %v225, 6
      %vm240 = vcmask 1041408
      %v241 = vsel %vm240, %v224, -inf
      %v242 = vrot.slane %v241, 4
      %v243 = vmax.f32 %v241, %v242
      %v244 = vrot.slane %v243, 2
      %v245 = vmax.f32 %v243, %v244
      %v246 = vrot.slane %v245, 1
      %v247 = vmax.f32 %v245, %v246
      %v248 = vsel %vm240, %v228, -inf
      %v249 = vrot.slane %v248, 4
      %v250 = vmax.f32 %v248, %v249
      %v251 = vrot.slane %v250, 2
      %v252 = vmax.f32 %v250, %v251
      %v253 = vrot.slane %v252, 1
      %v254 = vmax.f32 %v252, %v253
      %v255 = vsel %vm240, %v229, -inf
      %v256 = vrot.slane %v255, 4
      %v257 = vmax.f32 %v255, %v256
      %v258 = vrot.slane %v257, 2
      %v259 = vmax.f32 %v257, %v258
      %v260 = vrot.slane %v259, 1
      %v261 = vmax.f32 %v259, %v260
      %v262 = vsel %vm240, %v230, -inf
      %v263 = vrot.slane %v262, 4
      %v264 = vmax.f32 %v262, %v263
      %v265 = vrot.slane %v264, 2
      %v266 = vmax.f32 %v264, %v265
      %v267 = vrot.slane %v266, 1
      %v268 = vmax.f32 %v266, %v267
      %v269 = vsel %vm240, %v225, -inf
      %v270 = vrot.slane %v269, 4
      %v271 = vmax.f32 %v269, %v270
      %v272 = vrot.slane %v271, 2
      %v273 = vmax.f32 %v271, %v272
      %v274 = vrot.slane %v273, 1
      %v275 = vmax.f32 %v273, %v274
      %v276 = vsel %vm240, %v231, -inf
      %v277 = vrot.slane %v276, 4
      %v278 = vmax.f32 %v276, %v277
      %v279 = vrot.slane %v278, 2
      %v280 = vmax.f32 %v278, %v279
      %v281 = vrot.slane %v280, 1
      %v282 = vmax.f32 %v280, %v281
      %v283 = vsel %vm240, %v232, -inf
      %v284 = vrot.slane %v283, 4
      %v285 = vmax.f32 %v283, %v284
      %v286 = vrot.slane %v285, 2
      %v287 = vmax.f32 %v285, %v286
      %v288 = vrot.slane %v287, 1
      %v289 = vmax.f32 %v287, %v288
      %v290 = vsel %vm240, %v233, -inf
      %v291 = vrot.slane %v290, 4
      %v292 = vmax.f32 %v290, %v291
      %v293 = vrot.slane %v292, 2
      %v294 = vmax.f32 %v292, %v293
      %v295 = vrot.slane %v294, 1
      %v296 = vmax.f32 %v294, %v295
      %305 = vrot.lane.b32.xlu0 %v247, 112
      %v306 = vpop.permute.xlu0 %305
      %307 = vrot.lane.b32.xlu0 %v254, 112
      %v308 = vpop.permute.xlu0 %307
      %309 = vrot.lane.b32.xlu0 %v261, 112
      %v310 = vpop.permute.xlu0 %309
      %311 = vrot.lane.b32.xlu0 %v268, 112
      %v312 = vpop.permute.xlu0 %311
      %313 = vrot.lane.b32.xlu0 %v275, 112
      %v314 = vpop.permute.xlu0 %313
      %315 = vrot.lane.b32.xlu0 %v282, 112
      %v316 = vpop.permute.xlu0 %315
      %317 = vrot.lane.b32.xlu0 %v289, 112
      %v318 = vpop.permute.xlu0 %317
      %319 = vrot.lane.b32.xlu0 %v296, 112
      %v320 = vpop.permute.xlu0 %319
      %321 = vrot.lane.b32.xlu0 %v247, 96
      %v322 = vpop.permute.xlu0 %321
      %323 = vrot.lane.b32.xlu0 %v254, 96
      %v324 = vpop.permute.xlu0 %323
      %325 = vrot.lane.b32.xlu0 %v261, 96
      %v326 = vpop.permute.xlu0 %325
      %327 = vrot.lane.b32.xlu0 %v268, 96
      %v328 = vpop.permute.xlu0 %327
      %329 = vrot.lane.b32.xlu0 %v275, 96
      %v330 = vpop.permute.xlu0 %329
      %331 = vrot.lane.b32.xlu0 %v282, 96
      %v332 = vpop.permute.xlu0 %331
      %333 = vrot.lane.b32.xlu0 %v289, 96
      %v334 = vpop.permute.xlu0 %333
      %335 = vrot.lane.b32.xlu0 %v296, 96
      %v336 = vpop.permute.xlu0 %335
      %337 = vrot.lane.b32.xlu0 %v247, 80
      %v338 = vpop.permute.xlu0 %337
      %339 = vrot.lane.b32.xlu0 %v254, 80
      %v340 = vpop.permute.xlu0 %339
      %341 = vrot.lane.b32.xlu0 %v261, 80
      %v342 = vpop.permute.xlu0 %341
      %343 = vrot.lane.b32.xlu0 %v268, 80
      %v344 = vpop.permute.xlu0 %343
      %345 = vrot.lane.b32.xlu0 %v275, 80
      %v346 = vpop.permute.xlu0 %345
      %347 = vrot.lane.b32.xlu0 %v282, 80
      %v348 = vpop.permute.xlu0 %347
      %349 = vrot.lane.b32.xlu0 %v289, 80
      %v350 = vpop.permute.xlu0 %349
      %351 = vrot.lane.b32.xlu0 %v296, 80
      %v352 = vpop.permute.xlu0 %351
      %353 = vrot.lane.b32.xlu0 %v247, 64
      %v354 = vpop.permute.xlu0 %353
      %355 = vrot.lane.b32.xlu0 %v254, 64
      %v356 = vpop.permute.xlu0 %355
      %357 = vrot.lane.b32.xlu0 %v261, 64
      %v358 = vpop.permute.xlu0 %357
      %359 = vrot.lane.b32.xlu0 %v268, 64
      %v360 = vpop.permute.xlu0 %359
      %361 = vrot.lane.b32.xlu0 %v275, 64
      %v362 = vpop.permute.xlu0 %361
      %363 = vrot.lane.b32.xlu0 %v282, 64
      %v364 = vpop.permute.xlu0 %363
      %365 = vrot.lane.b32.xlu0 %v289, 64
      %v366 = vpop.permute.xlu0 %365
      %367 = vrot.lane.b32.xlu0 %v296, 64
      %v368 = vpop.permute.xlu0 %367
      %369 = vrot.lane.b32.xlu0 %v247, 48
      %v370 = vpop.permute.xlu0 %369
      %371 = vrot.lane.b32.xlu0 %v254, 48
      %v372 = vpop.permute.xlu0 %371
      %373 = vrot.lane.b32.xlu0 %v261, 48
      %v374 = vpop.permute.xlu0 %373
      %375 = vrot.lane.b32.xlu0 %v268, 48
      %v376 = vpop.permute.xlu0 %375
      %377 = vrot.lane.b32.xlu0 %v275, 48
      %v378 = vpop.permute.xlu0 %377
      %379 = vrot.lane.b32.xlu0 %v282, 48
      %v380 = vpop.permute.xlu0 %379
      %381 = vrot.lane.b32.xlu0 %v289, 48
      %v382 = vpop.permute.xlu0 %381
      %383 = vrot.lane.b32.xlu0 %v296, 48
      %v384 = vpop.permute.xlu0 %383
      %385 = vrot.lane.b32.xlu0 %v247, 32
      %v386 = vpop.permute.xlu0 %385
      %387 = vrot.lane.b32.xlu0 %v254, 32
      %v388 = vpop.permute.xlu0 %387
      %389 = vrot.lane.b32.xlu0 %v261, 32
      %v390 = vpop.permute.xlu0 %389
      %391 = vrot.lane.b32.xlu0 %v268, 32
      %v392 = vpop.permute.xlu0 %391
      %393 = vrot.lane.b32.xlu0 %v275, 32
      %v394 = vpop.permute.xlu0 %393
      %395 = vrot.lane.b32.xlu0 %v282, 32
      %v396 = vpop.permute.xlu0 %395
      %397 = vrot.lane.b32.xlu0 %v289, 32
      %v398 = vpop.permute.xlu0 %397
      %399 = vrot.lane.b32.xlu0 %v296, 32
      %v400 = vpop.permute.xlu0 %399
      %401 = vrot.lane.b32.xlu0 %v247, 16
      %v402 = vpop.permute.xlu0 %401
      %403 = vrot.lane.b32.xlu0 %v254, 16
      %v404 = vpop.permute.xlu0 %403
      %405 = vrot.lane.b32.xlu0 %v261, 16
      %v406 = vpop.permute.xlu0 %405
      %407 = vrot.lane.b32.xlu0 %v268, 16
      %v408 = vpop.permute.xlu0 %407
      %409 = vrot.lane.b32.xlu0 %v275, 16
      %v410 = vpop.permute.xlu0 %409
      %411 = vrot.lane.b32.xlu0 %v282, 16
      %v412 = vpop.permute.xlu0 %411
      %413 = vrot.lane.b32.xlu0 %v289, 16
      %v414 = vpop.permute.xlu0 %413
      %415 = vrot.lane.b32.xlu0 %v296, 16
      %v416 = vpop.permute.xlu0 %415
      %v417 = vrot.slane %v254, 7
      %vm418 = vcmask 1041409
      %v419 = vsel %vm418, %v417, %v247
      %v420 = vrot.slane %v261, 6
      %vm421 = vcmask 1042434
      %v422 = vsel %vm421, %v420, %v419
      %v423 = vrot.slane %v268, 5
      %vm424 = vcmask 1043459
      %v425 = vsel %vm424, %v423, %v422
      %v426 = vrot.slane %v275, 4
      %vm427 = vcmask 1044484
      %v428 = vsel %vm427, %v426, %v425
      %v429 = vrot.slane %v282, 3
      %vm430 = vcmask 1045509
      %v431 = vsel %vm430, %v429, %v428
      %v432 = vrot.slane %v289, 2
      %vm433 = vcmask 1046534
      %v434 = vsel %vm433, %v432, %v431
      %v435 = vrot.slane %v296, 1
      %vm436 = vcmask 1047559
      %v437 = vsel %vm436, %v435, %v434
      %v438 = vrot.slane %v308, 7
      %v439 = vsel %vm418, %v438, %v306
      %v440 = vrot.slane %v310, 6
      %v441 = vsel %vm421, %v440, %v439
      %v442 = vrot.slane %v312, 5
      %v443 = vsel %vm424, %v442, %v441
      %v444 = vrot.slane %v314, 4
      %v445 = vsel %vm427, %v444, %v443
      %v446 = vrot.slane %v316, 3
      %v447 = vsel %vm430, %v446, %v445
      %v448 = vrot.slane %v318, 2
      %v449 = vsel %vm433, %v448, %v447
      %v450 = vrot.slane %v320, 1
      %v451 = vsel %vm436, %v450, %v449
      %v452 = vrot.slane %v324, 7
      %v453 = vsel %vm418, %v452, %v322
      %v454 = vrot.slane %v326, 6
      %v455 = vsel %vm421, %v454, %v453
      %v456 = vrot.slane %v328, 5
      %v457 = vsel %vm424, %v456, %v455
      %v458 = vrot.slane %v330, 4
      %v459 = vsel %vm427, %v458, %v457
      %v460 = vrot.slane %v332, 3
      %v461 = vsel %vm430, %v460, %v459
      %v462 = vrot.slane %v334, 2
      %v463 = vsel %vm433, %v462, %v461
      %v464 = vrot.slane %v336, 1
      %v465 = vsel %vm436, %v464, %v463
      %v466 = vrot.slane %v340, 7
      %v467 = vsel %vm418, %v466, %v338
      %v468 = vrot.slane %v342, 6
      %v469 = vsel %vm421, %v468, %v467
      %v470 = vrot.slane %v344, 5
      %v471 = vsel %vm424, %v470, %v469
      %v472 = vrot.slane %v346, 4
      %v473 = vsel %vm427, %v472, %v471
      %v474 = vrot.slane %v348, 3
      %v475 = vsel %vm430, %v474, %v473
      %v476 = vrot.slane %v350, 2
      %v477 = vsel %vm433, %v476, %v475
      %v478 = vrot.slane %v352, 1
      %v479 = vsel %vm436, %v478, %v477
      %v480 = vrot.slane %v356, 7
      %v481 = vsel %vm418, %v480, %v354
      %v482 = vrot.slane %v358, 6
      %v483 = vsel %vm421, %v482, %v481
      %v484 = vrot.slane %v360, 5
      %v485 = vsel %vm424, %v484, %v483
      %v486 = vrot.slane %v362, 4
      %v487 = vsel %vm427, %v486, %v485
      %v488 = vrot.slane %v364, 3
      %v489 = vsel %vm430, %v488, %v487
      %v490 = vrot.slane %v366, 2
      %v491 = vsel %vm433, %v490, %v489
      %v492 = vrot.slane %v368, 1
      %v493 = vsel %vm436, %v492, %v491
      %v494 = vrot.slane %v372, 7
      %v495 = vsel %vm418, %v494, %v370
      %v496 = vrot.slane %v374, 6
      %v497 = vsel %vm421, %v496, %v495
      %v498 = vrot.slane %v376, 5
      %v499 = vsel %vm424, %v498, %v497
      %v500 = vrot.slane %v378, 4
      %v501 = vsel %vm427, %v500, %v499
      %v502 = vrot.slane %v380, 3
      %v503 = vsel %vm430, %v502, %v501
      %v504 = vrot.slane %v382, 2
      %v505 = vsel %vm433, %v504, %v503
      %v506 = vrot.slane %v384, 1
      %v507 = vsel %vm436, %v506, %v505
      %v508 = vrot.slane %v388, 7
      %v509 = vsel %vm418, %v508, %v386
      %v510 = vrot.slane %v390, 6
      %v511 = vsel %vm421, %v510, %v509
      %v512 = vrot.slane %v392, 5
      %v513 = vsel %vm424, %v512, %v511
      %v514 = vrot.slane %v394, 4
      %v515 = vsel %vm427, %v514, %v513
      %v516 = vrot.slane %v396, 3
      %v517 = vsel %vm430, %v516, %v515
      %v518 = vrot.slane %v398, 2
      %v519 = vsel %vm433, %v518, %v517
      %v520 = vrot.slane %v400, 1
      %v521 = vsel %vm436, %v520, %v519
      %v522 = vrot.slane %v404, 7
      %v523 = vsel %vm418, %v522, %v402
      %v524 = vrot.slane %v406, 6
      %v525 = vsel %vm421, %v524, %v523
      %v526 = vrot.slane %v408, 5
      %v527 = vsel %vm424, %v526, %v525
      %v528 = vrot.slane %v410, 4
      %v529 = vsel %vm427, %v528, %v527
      %v530 = vrot.slane %v412, 3
      %v531 = vsel %vm430, %v530, %v529
      %v532 = vrot.slane %v414, 2
      %v533 = vsel %vm433, %v532, %v531
      %v534 = vrot.slane %v416, 1
      %v535 = vsel %vm436, %v534, %v533
      %v544 = vrot.slane %v465, 4
      %vm545 = vcmask 1047556
      %v546 = vsel %vm545, %v544, %v437
      %v547 = vrot.slane %v437, 4
      %v548 = vsel %vm545, %v465, %v547
      %v550 = vunpack.c.l.s4 1983009808
      %v551 = vunpack.c.0.s8 %v550
      %v552 = vperm.slane %v546, %v551
      %v554 = vunpack.c.l.s4 1983009808
      %v555 = vunpack.c.0.s8 %v554
      %v556 = vperm.slane %v548, %v555
      %v557 = vrot.slane %v479, 4
      %v558 = vsel %vm545, %v557, %v451
      %v559 = vrot.slane %v451, 4
      %v560 = vsel %vm545, %v479, %v559
      %v562 = vunpack.c.l.s4 1983009808
      %v563 = vunpack.c.0.s8 %v562
      %v564 = vperm.slane %v558, %v563
      %v566 = vunpack.c.l.s4 1983009808
      %v567 = vunpack.c.0.s8 %v566
      %v568 = vperm.slane %v560, %v567
      %v569 = vrot.slane %v521, 4
      %v570 = vsel %vm545, %v569, %v493
      %v571 = vrot.slane %v493, 4
      %v572 = vsel %vm545, %v521, %v571
      %v574 = vunpack.c.l.s4 1983009808
      %v575 = vunpack.c.0.s8 %v574
      %v576 = vperm.slane %v570, %v575
      %v578 = vunpack.c.l.s4 1983009808
      %v579 = vunpack.c.0.s8 %v578
      %v580 = vperm.slane %v572, %v579
      %v581 = vrot.slane %v535, 4
      %v582 = vsel %vm545, %v581, %v507
      %v583 = vrot.slane %v507, 4
      %v584 = vsel %vm545, %v535, %v583
      %v586 = vunpack.c.l.s4 1983009808
      %v587 = vunpack.c.0.s8 %v586
      %v588 = vperm.slane %v582, %v587
      %v590 = vunpack.c.l.s4 1983009808
      %v591 = vunpack.c.0.s8 %v590
      %v592 = vperm.slane %v584, %v591
      %v593 = vrot.slane %v564, 4
      %v594 = vsel %vm545, %v593, %v552
      %v595 = vrot.slane %v552, 4
      %v596 = vsel %vm545, %v564, %v595
      %v598 = vunpack.c.l.s4 1934713408
      %v599 = vunpack.c.0.s8 %v598
      %v600 = vperm.slane %v594, %v599
      %v602 = vunpack.c.l.s4 1934713408
      %v603 = vunpack.c.0.s8 %v602
      %v604 = vperm.slane %v596, %v603
      %v605 = vrot.slane %v568, 4
      %v606 = vsel %vm545, %v605, %v556
      %v607 = vrot.slane %v556, 4
      %v608 = vsel %vm545, %v568, %v607
      %v610 = vunpack.c.l.s4 1934713408
      %v611 = vunpack.c.0.s8 %v610
      %v612 = vperm.slane %v606, %v611
      %v614 = vunpack.c.l.s4 1934713408
      %v615 = vunpack.c.0.s8 %v614
      %v616 = vperm.slane %v608, %v615
      %v617 = vrot.slane %v588, 4
      %v618 = vsel %vm545, %v617, %v576
      %v619 = vrot.slane %v576, 4
      %v620 = vsel %vm545, %v588, %v619
      %v622 = vunpack.c.l.s4 1934713408
      %v623 = vunpack.c.0.s8 %v622
      %v624 = vperm.slane %v618, %v623
      %v626 = vunpack.c.l.s4 1934713408
      %v627 = vunpack.c.0.s8 %v626
      %v628 = vperm.slane %v620, %v627
      %v629 = vrot.slane %v592, 4
      %v630 = vsel %vm545, %v629, %v580
      %v631 = vrot.slane %v580, 4
      %v632 = vsel %vm545, %v592, %v631
      %v634 = vunpack.c.l.s4 1934713408
      %v635 = vunpack.c.0.s8 %v634
      %v636 = vperm.slane %v630, %v635
      %v638 = vunpack.c.l.s4 1934713408
      %v639 = vunpack.c.0.s8 %v638
      %v640 = vperm.slane %v632, %v639
      %v641 = vrot.slane %v624, 4
      %v642 = vsel %vm545, %v641, %v600
      %v643 = vrot.slane %v600, 4
      %v644 = vsel %vm545, %v624, %v643
      %v645 = vrot.slane %v628, 4
      %v646 = vsel %vm545, %v645, %v604
      %v647 = vrot.slane %v604, 4
      %v648 = vsel %vm545, %v628, %v647
      %v649 = vrot.slane %v636, 4
      %v650 = vsel %vm545, %v649, %v612
      %v651 = vrot.slane %v612, 4
      %v652 = vsel %vm545, %v636, %v651
      %v653 = vrot.slane %v640, 4
      %v654 = vsel %vm545, %v653, %v616
      %v655 = vrot.slane %v616, 4
      %v656 = vsel %vm545, %v640, %v655
      %665 = vrot.lane.b32.xlu0 %v642, 120
      %v666 = vpop.permute.xlu0 %665
      %667 = vrot.lane.b32.xlu0 %v644, 120
      %v668 = vpop.permute.xlu0 %667
      %669 = vrot.lane.b32.xlu0 %v646, 120
      %v670 = vpop.permute.xlu0 %669
      %671 = vrot.lane.b32.xlu0 %v648, 120
      %v672 = vpop.permute.xlu0 %671
      %673 = vrot.lane.b32.xlu0 %v650, 120
      %v674 = vpop.permute.xlu0 %673
      %675 = vrot.lane.b32.xlu0 %v652, 120
      %v676 = vpop.permute.xlu0 %675
      %677 = vrot.lane.b32.xlu0 %v654, 120
      %v678 = vpop.permute.xlu0 %677
      %679 = vrot.lane.b32.xlu0 %v656, 120
      %v680 = vpop.permute.xlu0 %679
      %v689 = vmax.f32 %v642, %v666
      %v690 = vmax.f32 %v644, %v668
      %v691 = vmax.f32 %v646, %v670
      %v692 = vmax.f32 %v648, %v672
      %v693 = vmax.f32 %v650, %v674
      %v694 = vmax.f32 %v652, %v676
      %v695 = vmax.f32 %v654, %v678
      %v696 = vmax.f32 %v656, %v680
      %vm697 = vcmask 64512
      %698 = vst.msk [vmem:[%s208] sm:$0xff] %vm697, %v689
      %699 = vst.msk [vmem:[%s208 + $0x8] sm:$0xff] %vm697, %v690
      %700 = vst.msk [vmem:[%s208 + $0x10] sm:$0xff] %vm697, %v691
      %701 = vst.msk [vmem:[%s208 + $0x18] sm:$0xff] %vm697, %v692
      %702 = vst.msk [vmem:[%s208 + $0x20] sm:$0xff] %vm697, %v693
      %703 = vst.msk [vmem:[%s208 + $0x28] sm:$0xff] %vm697, %v694
      %704 = vst.msk [vmem:[%s208 + $0x30] sm:$0xff] %vm697, %v695
      %705 = vst.msk [vmem:[%s208 + $0x38] sm:$0xff] %vm697, %v696
      %s706 = smul.u32 8, %s19
      %p707 = scmp.lt.s32.totalorder %s18, 1
      %s708 = scalar_select %p707, %s18, 1
      %p709 = scmp.lt.s32.totalorder %s706, 7
      %s710 = scalar_select %p709, %s706, 7
      %s711 = smul.addr %s708, 8
      %s712 = sadd.s32 %s710, %s711
      %s713 = smul.addr %s712, 8
      %s714 = scalar_lea.vmem %s3, %s713
      // Predicated region
      $region33: #{conv_block_forward.3} parent=31 // pred_check
        %p715 = pneg %p116
      $region34: #{conv_block_forward.3} parent=31 // pred_check_branch
        %717 = sbr.rel (%p715) target = $region36
      $region35: #{conv_block_forward.3} parent=31 // pred_region
        %s718 = smul.u32 8, %s19
      $region36: #{conv_block_forward.3} parent=31 // pred_fallthru
        _
    $region32: #{conv_block_forward.3} parent=5 // pred_fallthru
      _
    %p719 = scmp.le.s32.totalorder 2, %s9
    // Predicated region
    $region37: #{conv_block_forward.3} parent=5 // pred_check
      %p720 = pneg %p719
    $region38: #{conv_block_forward.3} parent=5 // pred_check_branch
      %722 = sbr.rel (%p720) target = $region40
    $region39: #{conv_block_forward.3} parent=5 // pred_region
      %s723 = ssub.s32 %s9, 2
      // Predicated region
      $region41: #{conv_block_forward.3} parent=39 // pred_check
        %p724 = pneg %p122
      $region42: #{conv_block_forward.3} parent=39 // pred_check_branch
        %726 = sbr.rel (%p724) target = $region44
      $region43: #{conv_block_forward.3} parent=39 // pred_region
        %s727 = smul.u32 8, %s21
        %p728 = scmp.lt.s32.totalorder %s20, 1
        %s729 = scalar_select %p728, %s20, 1
        %p730 = scmp.lt.s32.totalorder %s727, 7
        %s731 = scalar_select %p730, %s727, 7
        %s732 = smul.addr %s729, 8
        %s733 = sadd.s32 %s731, %s732
        %s734 = smul.addr %s733, 8
        %s735 = scalar_lea.vmem %s3, %s734
      $region44: #{conv_block_forward.3} parent=39 // pred_fallthru
        _
    $region40: #{conv_block_forward.3} parent=5 // pred_fallthru
      _
  $region6: #{conv_block_forward.3} parent=0 // loop_footer
    %s13 = sadd.s32 1, %s9
  $region7: #{conv_block_forward.3} parent=0 // loop_footer_branch
    %8 = sbr.rel target = $region3
  $region8: #{conv_block_forward.3} parent=0 // loop_exit
    _

</llo_original>
